<compile_context>
chip_gen: v5e
topology: v5e:2x2
jax: 0.10.0
libtpu: 0.0.40
codegen_flags: <defaults>
</compile_context>

<pallas_src>
import math

import jax
import jax.numpy as jnp
from jax.experimental import pallas as pl
from jax.experimental.pallas import tpu as pltpu

# ---------------- model config ----------------------------------------------
B = 2
OUTPUT_DIM = 128            # embedding dim E
HIDDEN_DIM = OUTPUT_DIM     # hidden_dim=None -> hidden == output_dim (no proj)
TS_DIM = 16
NHEAD = 8                   # inert for length-1 sequences (heads concat back)
NUM_LAYERS = 4
FFN_DIM = 256
LN_EPS = 1e-5

# packed "small" slab row layout (per layer): [L, 8, D]
_R_BATTN, _R_LN1G, _R_LN1B, _R_LN2G, _R_LN2B, _R_B2 = 0, 1, 2, 3, 4, 5
# packed head slab row layout: [8, D]
_R_LNOG, _R_LNOB, _R_BOUT, _R_PE = 0, 1, 2, 3


# ---------------- math helpers (array-level; used in-kernel and in reference) -
def _layernorm(x, g, b):
    # PyTorch LayerNorm: biased variance, eps inside the sqrt. x:[N,D] g,b:[1,D]
    m = jnp.mean(x, axis=-1, keepdims=True)
    v = jnp.mean(jnp.square(x - m), axis=-1, keepdims=True)
    return (x - m) * jax.lax.rsqrt(v + LN_EPS) * g + b


def _linear(x, w, b):
    # PyTorch nn.Linear: y = x @ w.T + b, w:[out, in].
    # Weights arrive in bf16; cast activations to bf16 only at the MXU input,
    # accumulate in f32, add f32 bias.
    y = jax.lax.dot_general(x.astype(w.dtype), w, (((1,), (1,)), ((), ())),
                            preferred_element_type=jnp.float32)
    return y + b


def _gelu(x):
    # exact (erf) GELU, matching nn.GELU() default, in f32
    return 0.5 * x * (1.0 + jax.lax.erf(x * (1.0 / math.sqrt(2.0))))


# ---------------- fused CrossAttnDecoder kernel -------------------------------
def _decoder_kernel(ts_ref, txt_ref,
                    w_attn_ref, w1_ref, b1_ref, w2_ref,
                    small_ref, wout_ref, head_ref,
                    out_ref):
    head = head_ref[...]                              # [8, D] f32 (packed slab)
    pe = head[_R_PE:_R_PE + 1, :]                     # seq_len=1 sinusoidal PE row
    tgt = ts_ref[...] + pe                            # [TB, D] f32
    mem = txt_ref[...] + pe                           # [TB, D] f32

    # Layer loop statically unrolled; stacked-weight refs indexed with static
    # ints (zero-cost ref views -> bf16 vreg loads feeding the MXU directly).
    for l in range(NUM_LAYERS):
        sm = small_ref[l]                             # [8, D] f32 packed vectors

        # ---- cross-attention, L_q = L_kv = 1: softmax == 1, q/k cancel, and
        # out_proj(v_proj(mem)) is exactly one folded matmul ----
        attn = _linear(mem, w_attn_ref[l], sm[_R_BATTN:_R_BATTN + 1, :])
        tgt = _layernorm(tgt + attn,
                         sm[_R_LN1G:_R_LN1G + 1, :], sm[_R_LN1B:_R_LN1B + 1, :])

        # ---- feed-forward (f32 elementwise, bf16 MXU inputs) ----
        h1 = _gelu(_linear(tgt, w1_ref[l], b1_ref[l]))
        ff = _linear(h1, w2_ref[l], sm[_R_B2:_R_B2 + 1, :])
        tgt = _layernorm(tgt + ff,
                         sm[_R_LN2G:_R_LN2G + 1, :], sm[_R_LN2B:_R_LN2B + 1, :])

    # output head: LayerNorm(hidden) -> Linear(hidden, ts_dim), lane-dense
    # (wout padded to [D, D]; columns >= TS_DIM are zero and sliced off outside)
    h = _layernorm(tgt, head[_R_LNOG:_R_LNOG + 1, :], head[_R_LNOB:_R_LNOB + 1, :])
    out_ref[...] = _linear(h, wout_ref[...],
                           head[_R_BOUT:_R_BOUT + 1, :]).astype(out_ref.dtype)


# ---------------- params ------------------------------------------------------
def init_params(key):
    keys = iter(jax.random.split(key, 24))

    def w(shape, scale=0.02):
        return (scale * jax.random.normal(next(keys), shape)).astype(jnp.float32)

    D, L, F, T = HIDDEN_DIM, NUM_LAYERS, FFN_DIM, TS_DIM
    return {
        # q/k projections exist in the real module but are mathematically inert
        # for length-1 sequences (softmax over one key == 1); kept only for
        # parameter parity — not fed to the kernel.
        'wq': w((L, D, D)), 'bq': jnp.zeros((L, D), jnp.float32),
        'wk': w((L, D, D)), 'bk': jnp.zeros((L, D), jnp.float32),
        # per-layer cross-attention block weights (stacked on the layer axis)
        'wv': w((L, D, D)), 'bv': w((L, D), 0.01),
        'wo': w((L, D, D)), 'bo': w((L, D), 0.01),
        'ln1_g': jnp.ones((L, D), jnp.float32), 'ln1_b': jnp.zeros((L, D), jnp.float32),
        'w1': w((L, F, D)), 'b1': w((L, F), 0.01),
        'w2': w((L, D, F)), 'b2': w((L, D), 0.01),
        'ln2_g': jnp.ones((L, D), jnp.float32), 'ln2_b': jnp.zeros((L, D), jnp.float32),
        # output head: LayerNorm(D) + Linear(D, ts_dim)
        'lno_g': jnp.ones((D,), jnp.float32), 'lno_b': jnp.zeros((D,), jnp.float32),
        'wout': w((T, D)), 'bout': w((T,), 0.01),
    }


def pack_params(p):
    """Fold out_proj into v_proj, pack small vectors, cast big weights to bf16."""
    D, L, F, T = HIDDEN_DIM, NUM_LAYERS, FFN_DIM, TS_DIM

    # MHA fold (exact for L_q=L_kv=1, dropout=0):  attn = mem @ (wo@wv)^T + (bv@wo^T + bo)
    w_attn = jnp.einsum('lij,ljk->lik', p['wo'], p['wv'])              # [L, D, D]
    b_attn = jnp.einsum('lj,lij->li', p['bv'], p['wo']) + p['bo']      # [L, D]

    zeros_ld = jnp.zeros((L, D), jnp.float32)
    small = jnp.stack([b_attn, p['ln1_g'], p['ln1_b'],
                       p['ln2_g'], p['ln2_b'], p['b2'],
                       zeros_ld, zeros_ld], axis=1)                    # [L, 8, D]

    # lane-dense output head: pad to full 128 columns
    wout_pad = jnp.zeros((D, D), jnp.float32).at[:T].set(p['wout'])    # [D, D]
    bout_pad = jnp.zeros((D,), jnp.float32).at[:T].set(p['bout'])      # [D]

    # seq_len=1 sinusoidal PE row: sin(0)=0 on even lanes, cos(0)=1 on odd lanes
    pe0 = jnp.zeros((D,), jnp.float32).at[1::2].set(1.0)
    zeros_d = jnp.zeros((D,), jnp.float32)
    head = jnp.stack([p['lno_g'], p['lno_b'], bout_pad, pe0,
                      zeros_d, zeros_d, zeros_d, zeros_d], axis=0)     # [8, D]

    return {
        'w_attn': w_attn.astype(jnp.bfloat16),            # [L, D, D]  bf16
        'w1': p['w1'].astype(jnp.bfloat16),                # [L, F, D]  bf16
        'b1': p['b1'].reshape(L, 1, F).astype(jnp.float32),  # [L, 1, F] f32 (F-dim kept separate)
        'w2': p['w2'].astype(jnp.bfloat16),                # [L, D, F]  bf16
        'small': small,                                    # [L, 8, D]  f32
        'wout': wout_pad.astype(jnp.bfloat16),             # [D, D]     bf16
        'head': head,                                      # [8, D]     f32
    }


# ---------------- wrapper ------------------------------------------------------
def _round_up(x, m):
    return (x + m - 1) // m * m


def cross_attn_decoder(ts_emb, txt_emb, packed):
    # The fusion relies on L_q = L_kv = 1 (length-1 sequences) and dropout = 0.
    if ts_emb.ndim == 3:
        ts_emb = ts_emb[:, 0, :]
    if txt_emb.ndim == 3:
        txt_emb = txt_emb[:, 0, :]
    assert ts_emb.ndim == 2 and txt_emb.ndim == 2
    assert ts_emb.shape == txt_emb.shape and ts_emb.shape[1] == HIDDEN_DIM

    nb = ts_emb.shape[0]
    tb = min(256, _round_up(nb, 8))        # batch tile (sublane-aligned)
    nb_pad = _round_up(nb, tb)
    if nb_pad != nb:
        pad = ((0, nb_pad - nb), (0, 0))
        ts_emb = jnp.pad(ts_emb, pad)
        txt_emb = jnp.pad(txt_emb, pad)

    D, L, F = HIDDEN_DIM, NUM_LAYERS, FFN_DIM

    def resident(shape):
        # full-array block, same block index every grid step -> DMA'd once,
        # stays resident in VMEM across all batch tiles
        return pl.BlockSpec(shape, lambda i, _s=shape: (0,) * len(_s))

    out = pl.pallas_call(
        _decoder_kernel,
        out_shape=jax.ShapeDtypeStruct((nb_pad, D), jnp.float32),
        grid_spec=pltpu.PrefetchScalarGridSpec(
            num_scalar_prefetch=0,
            grid=(nb_pad // tb,),
            in_specs=[
                pl.BlockSpec((tb, D), lambda i: (i, 0)),   # ts_emb   [TB, D]
                pl.BlockSpec((tb, D), lambda i: (i, 0)),   # txt_emb  [TB, D]
                resident((L, D, D)),                       # w_attn (bf16)
                resident((L, F, D)),                       # w1     (bf16)
                resident((L, 1, F)),                       # b1     (f32)
                resident((L, D, F)),                       # w2     (bf16)
                resident((L, 8, D)),                       # packed small (f32)
                resident((D, D)),                          # wout padded (bf16)
                resident((8, D)),                          # packed head + PE (f32)
            ],
            out_specs=pl.BlockSpec((tb, D), lambda i: (i, 0)),
        ),
        compiler_params=pltpu.CompilerParams(
            dimension_semantics=("parallel",),             # megacore / v7x 2-TC
        ),
    )(ts_emb, txt_emb,
      packed['w_attn'], packed['w1'], packed['b1'], packed['w2'],
      packed['small'], packed['wout'], packed['head'])

    return out[:nb, :TS_DIM]


# ---------------- pure-JAX reference (same folded/packed weights) -------------
def reference_forward(ts_emb, txt_emb, packed):
    head = packed['head']
    pe = head[_R_PE:_R_PE + 1, :]
    tgt = ts_emb + pe
    mem = txt_emb + pe
    for l in range(NUM_LAYERS):
        sm = packed['small'][l]
        attn = _linear(mem, packed['w_attn'][l], sm[_R_BATTN:_R_BATTN + 1, :])
        tgt = _layernorm(tgt + attn,
                         sm[_R_LN1G:_R_LN1G + 1, :], sm[_R_LN1B:_R_LN1B + 1, :])
        h1 = _gelu(_linear(tgt, packed['w1'][l], packed['b1'][l]))
        ff = _linear(h1, packed['w2'][l], sm[_R_B2:_R_B2 + 1, :])
        tgt = _layernorm(tgt + ff,
                         sm[_R_LN2G:_R_LN2G + 1, :], sm[_R_LN2B:_R_LN2B + 1, :])
    h = _layernorm(tgt, head[_R_LNOG:_R_LNOG + 1, :], head[_R_LNOB:_R_LNOB + 1, :])
    return _linear(h, packed['wout'], head[_R_BOUT:_R_BOUT + 1, :])[:, :TS_DIM]


if __name__ == "__main__":
    key = jax.random.PRNGKey(0)
    kp, k1, k2 = jax.random.split(key, 3)
    params = init_params(kp)
    packed = pack_params(params)

    ts_emb = jax.random.normal(k1, (B, OUTPUT_DIM), jnp.float32)
    txt_emb = jax.random.normal(k2, (B, OUTPUT_DIM), jnp.float32)

    fwd = jax.jit(lambda a, b: cross_attn_decoder(a, b, packed))
    out = jax.block_until_ready(fwd(ts_emb, txt_emb))
    assert out.shape == (B, TS_DIM), out.shape
    assert bool(jnp.all(jnp.isfinite(out)))

    ref = reference_forward(ts_emb, txt_emb, packed)
    assert bool(jnp.allclose(out, ref, atol=1e-2, rtol=1e-2)), \
        float(jnp.max(jnp.abs(out - ref)))

    print("KERNEL_OK")
</pallas_src>

<mosaic_0001>
module attributes {stable_mosaic.version = 11 : i64} {
  func.func @_decoder_kernel(%arg0: i32, %arg1: memref<8x128xf32, #tpu.memory_space<vmem>>, %arg2: memref<8x128xf32, #tpu.memory_space<vmem>>, %arg3: memref<4x128x128xbf16, #tpu.memory_space<vmem>>, %arg4: memref<4x256x128xbf16, #tpu.memory_space<vmem>>, %arg5: memref<4x1x256xf32, #tpu.memory_space<vmem>>, %arg6: memref<4x128x256xbf16, #tpu.memory_space<vmem>>, %arg7: memref<4x8x128xf32, #tpu.memory_space<vmem>>, %arg8: memref<128x128xbf16, #tpu.memory_space<vmem>>, %arg9: memref<8x128xf32, #tpu.memory_space<vmem>>, %arg10: memref<8x128xf32, #tpu.memory_space<vmem>>) attributes {dimension_semantics = [#tpu.dimension_semantics<parallel>], iteration_bounds = array<i64: 1>, scalar_prefetch = 0 : i64, scratch_operands = 0 : i64, tpu.core_type = #tpu.core_type<tc>, window_params = [{transform_indices = @transform_0, window_bounds = array<i64: 8, 128>}, {transform_indices = @transform_1, window_bounds = array<i64: 8, 128>}, {pipeline_mode = #tpu.pipeline_mode<synchronous>, transform_indices = @transform_2, window_bounds = array<i64: 4, 128, 128>}, {pipeline_mode = #tpu.pipeline_mode<synchronous>, transform_indices = @transform_3, window_bounds = array<i64: 4, 256, 128>}, {pipeline_mode = #tpu.pipeline_mode<synchronous>, transform_indices = @transform_4, window_bounds = array<i64: 4, 1, 256>}, {pipeline_mode = #tpu.pipeline_mode<synchronous>, transform_indices = @transform_5, window_bounds = array<i64: 4, 128, 256>}, {pipeline_mode = #tpu.pipeline_mode<synchronous>, transform_indices = @transform_6, window_bounds = array<i64: 4, 8, 128>}, {pipeline_mode = #tpu.pipeline_mode<synchronous>, transform_indices = @transform_7, window_bounds = array<i64: 128, 128>}, {pipeline_mode = #tpu.pipeline_mode<synchronous>, transform_indices = @transform_8, window_bounds = array<i64: 8, 128>}, {transform_indices = @transform_9, window_bounds = array<i64: 8, 128>}]} {
    %c0 = arith.constant 0 : index
    %c0_0 = arith.constant 0 : index
    %0 = vector.load %arg9[%c0, %c0_0] : memref<8x128xf32, #tpu.memory_space<vmem>>, vector<8x128xf32>
    %1 = vector.extract_strided_slice %0 {offsets = [3, 0], sizes = [1, 128], strides = [1, 1]} : vector<8x128xf32> to vector<1x128xf32>
    %c0_1 = arith.constant 0 : index
    %c0_2 = arith.constant 0 : index
    %2 = vector.load %arg1[%c0_1, %c0_2] : memref<8x128xf32, #tpu.memory_space<vmem>>, vector<8x128xf32>
    %3 = vector.broadcast %1 : vector<1x128xf32> to vector<8x128xf32>
    %4 = arith.addf %2, %3 : vector<8x128xf32>
    %c0_3 = arith.constant 0 : index
    %c0_4 = arith.constant 0 : index
    %5 = vector.load %arg2[%c0_3, %c0_4] : memref<8x128xf32, #tpu.memory_space<vmem>>, vector<8x128xf32>
    %6 = vector.broadcast %1 : vector<1x128xf32> to vector<8x128xf32>
    %7 = arith.addf %5, %6 : vector<8x128xf32>
    %c0_5 = arith.constant 0 : index
    %c0_6 = arith.constant 0 : index
    %c0_7 = arith.constant 0 : index
    %8 = vector.load %arg7[%c0_5, %c0_6, %c0_7] : memref<4x8x128xf32, #tpu.memory_space<vmem>>, vector<1x8x128xf32>
    %9 = vector.shape_cast %8 : vector<1x8x128xf32> to vector<8x128xf32>
    %c0_8 = arith.constant 0 : index
    %c0_9 = arith.constant 0 : index
    %c0_10 = arith.constant 0 : index
    %10 = vector.load %arg3[%c0_8, %c0_9, %c0_10] : memref<4x128x128xbf16, #tpu.memory_space<vmem>>, vector<1x128x128xbf16>
    %11 = vector.shape_cast %10 : vector<1x128x128xbf16> to vector<128x128xbf16>
    %12 = vector.extract_strided_slice %9 {offsets = [0, 0], sizes = [1, 128], strides = [1, 1]} : vector<8x128xf32> to vector<1x128xf32>
    %13 = arith.truncf %7 : vector<8x128xf32> to vector<8x128xbf16>
    %cst = arith.constant dense<0.000000e+00> : vector<8x128xf32>
    %14 = tpu.matmul %13, %11, %cst {dimension_numbers = #tpu.dot_dimension_numbers<[1], [1], [0], [0], [0, 0, 1, 0], [], []>} : vector<8x128xbf16>, vector<128x128xbf16>, vector<8x128xf32> -> vector<8x128xf32>
    %15 = vector.broadcast %12 : vector<1x128xf32> to vector<8x128xf32>
    %16 = arith.addf %14, %15 : vector<8x128xf32>
    %17 = arith.addf %4, %16 : vector<8x128xf32>
    %18 = vector.extract_strided_slice %9 {offsets = [1, 0], sizes = [1, 128], strides = [1, 1]} : vector<8x128xf32> to vector<1x128xf32>
    %19 = vector.extract_strided_slice %9 {offsets = [2, 0], sizes = [1, 128], strides = [1, 1]} : vector<8x128xf32> to vector<1x128xf32>
    %cst_11 = arith.constant dense<0.000000e+00> : vector<8xf32>
    %20 = vector.multi_reduction <add>, %17, %cst_11 [1] : vector<8x128xf32> to vector<8xf32>
    %21 = vector.shape_cast %20 : vector<8xf32> to vector<8x1xf32>
    %cst_12 = arith.constant 1.280000e+02 : f32
    %22 = vector.broadcast %cst_12 : f32 to vector<8x1xf32>
    %23 = arith.divf %21, %22 : vector<8x1xf32>
    %24 = vector.broadcast %23 : vector<8x1xf32> to vector<8x128xf32>
    %25 = arith.subf %17, %24 : vector<8x128xf32>
    %26 = arith.mulf %25, %25 : vector<8x128xf32>
    %cst_13 = arith.constant dense<0.000000e+00> : vector<8xf32>
    %27 = vector.multi_reduction <add>, %26, %cst_13 [1] : vector<8x128xf32> to vector<8xf32>
    %28 = vector.shape_cast %27 : vector<8xf32> to vector<8x1xf32>
    %cst_14 = arith.constant 1.280000e+02 : f32
    %29 = vector.broadcast %cst_14 : f32 to vector<8x1xf32>
    %30 = arith.divf %28, %29 : vector<8x1xf32>
    %31 = vector.broadcast %23 : vector<8x1xf32> to vector<8x128xf32>
    %32 = arith.subf %17, %31 : vector<8x128xf32>
    %cst_15 = arith.constant 9.99999974E-6 : f32
    %33 = vector.broadcast %cst_15 : f32 to vector<8x1xf32>
    %34 = arith.addf %30, %33 : vector<8x1xf32>
    %35 = math.rsqrt %34 : vector<8x1xf32>
    %36 = vector.broadcast %35 : vector<8x1xf32> to vector<8x128xf32>
    %37 = arith.mulf %32, %36 : vector<8x128xf32>
    %38 = vector.broadcast %18 : vector<1x128xf32> to vector<8x128xf32>
    %39 = arith.mulf %37, %38 : vector<8x128xf32>
    %40 = vector.broadcast %19 : vector<1x128xf32> to vector<8x128xf32>
    %41 = arith.addf %39, %40 : vector<8x128xf32>
    %c0_16 = arith.constant 0 : index
    %c0_17 = arith.constant 0 : index
    %c0_18 = arith.constant 0 : index
    %42 = vector.load %arg4[%c0_16, %c0_17, %c0_18] : memref<4x256x128xbf16, #tpu.memory_space<vmem>>, vector<1x256x128xbf16>
    %43 = vector.shape_cast %42 : vector<1x256x128xbf16> to vector<256x128xbf16>
    %c0_19 = arith.constant 0 : index
    %c0_20 = arith.constant 0 : index
    %c0_21 = arith.constant 0 : index
    %44 = vector.load %arg5[%c0_19, %c0_20, %c0_21] : memref<4x1x256xf32, #tpu.memory_space<vmem>>, vector<1x1x256xf32>
    %45 = vector.shape_cast %44 : vector<1x1x256xf32> to vector<1x256xf32>
    %46 = arith.truncf %41 : vector<8x128xf32> to vector<8x128xbf16>
    %cst_22 = arith.constant dense<0.000000e+00> : vector<8x256xf32>
    %47 = tpu.matmul %46, %43, %cst_22 {dimension_numbers = #tpu.dot_dimension_numbers<[1], [1], [0], [0], [0, 0, 1, 0], [], []>} : vector<8x128xbf16>, vector<256x128xbf16>, vector<8x256xf32> -> vector<8x256xf32>
    %48 = vector.broadcast %45 : vector<1x256xf32> to vector<8x256xf32>
    %49 = arith.addf %47, %48 : vector<8x256xf32>
    %cst_23 = arith.constant 5.000000e-01 : f32
    %50 = vector.broadcast %cst_23 : f32 to vector<8x256xf32>
    %51 = arith.mulf %50, %49 : vector<8x256xf32>
    %cst_24 = arith.constant 0.707106769 : f32
    %52 = vector.broadcast %cst_24 : f32 to vector<8x256xf32>
    %53 = arith.mulf %49, %52 : vector<8x256xf32>
    %54 = math.erf %53 : vector<8x256xf32>
    %cst_25 = arith.constant 1.000000e+00 : f32
    %55 = vector.broadcast %cst_25 : f32 to vector<8x256xf32>
    %56 = arith.addf %55, %54 : vector<8x256xf32>
    %57 = arith.mulf %51, %56 : vector<8x256xf32>
    %c0_26 = arith.constant 0 : index
    %c0_27 = arith.constant 0 : index
    %c0_28 = arith.constant 0 : index
    %58 = vector.load %arg6[%c0_26, %c0_27, %c0_28] : memref<4x128x256xbf16, #tpu.memory_space<vmem>>, vector<1x128x256xbf16>
    %59 = vector.shape_cast %58 : vector<1x128x256xbf16> to vector<128x256xbf16>
    %60 = vector.extract_strided_slice %9 {offsets = [5, 0], sizes = [1, 128], strides = [1, 1]} : vector<8x128xf32> to vector<1x128xf32>
    %61 = arith.truncf %57 : vector<8x256xf32> to vector<8x256xbf16>
    %cst_29 = arith.constant dense<0.000000e+00> : vector<8x128xf32>
    %62 = tpu.matmul %61, %59, %cst_29 {dimension_numbers = #tpu.dot_dimension_numbers<[1], [1], [0], [0], [0, 0, 1, 0], [], []>} : vector<8x256xbf16>, vector<128x256xbf16>, vector<8x128xf32> -> vector<8x128xf32>
    %63 = vector.broadcast %60 : vector<1x128xf32> to vector<8x128xf32>
    %64 = arith.addf %62, %63 : vector<8x128xf32>
    %65 = arith.addf %41, %64 : vector<8x128xf32>
    %66 = vector.extract_strided_slice %9 {offsets = [3, 0], sizes = [1, 128], strides = [1, 1]} : vector<8x128xf32> to vector<1x128xf32>
    %67 = vector.extract_strided_slice %9 {offsets = [4, 0], sizes = [1, 128], strides = [1, 1]} : vector<8x128xf32> to vector<1x128xf32>
    %cst_30 = arith.constant dense<0.000000e+00> : vector<8xf32>
    %68 = vector.multi_reduction <add>, %65, %cst_30 [1] : vector<8x128xf32> to vector<8xf32>
    %69 = vector.shape_cast %68 : vector<8xf32> to vector<8x1xf32>
    %cst_31 = arith.constant 1.280000e+02 : f32
    %70 = vector.broadcast %cst_31 : f32 to vector<8x1xf32>
    %71 = arith.divf %69, %70 : vector<8x1xf32>
    %72 = vector.broadcast %71 : vector<8x1xf32> to vector<8x128xf32>
    %73 = arith.subf %65, %72 : vector<8x128xf32>
    %74 = arith.mulf %73, %73 : vector<8x128xf32>
    %cst_32 = arith.constant dense<0.000000e+00> : vector<8xf32>
    %75 = vector.multi_reduction <add>, %74, %cst_32 [1] : vector<8x128xf32> to vector<8xf32>
    %76 = vector.shape_cast %75 : vector<8xf32> to vector<8x1xf32>
    %cst_33 = arith.constant 1.280000e+02 : f32
    %77 = vector.broadcast %cst_33 : f32 to vector<8x1xf32>
    %78 = arith.divf %76, %77 : vector<8x1xf32>
    %79 = vector.broadcast %71 : vector<8x1xf32> to vector<8x128xf32>
    %80 = arith.subf %65, %79 : vector<8x128xf32>
    %cst_34 = arith.constant 9.99999974E-6 : f32
    %81 = vector.broadcast %cst_34 : f32 to vector<8x1xf32>
    %82 = arith.addf %78, %81 : vector<8x1xf32>
    %83 = math.rsqrt %82 : vector<8x1xf32>
    %84 = vector.broadcast %83 : vector<8x1xf32> to vector<8x128xf32>
    %85 = arith.mulf %80, %84 : vector<8x128xf32>
    %86 = vector.broadcast %66 : vector<1x128xf32> to vector<8x128xf32>
    %87 = arith.mulf %85, %86 : vector<8x128xf32>
    %88 = vector.broadcast %67 : vector<1x128xf32> to vector<8x128xf32>
    %89 = arith.addf %87, %88 : vector<8x128xf32>
    %c1 = arith.constant 1 : index
    %c0_35 = arith.constant 0 : index
    %c0_36 = arith.constant 0 : index
    %90 = vector.load %arg7[%c1, %c0_35, %c0_36] : memref<4x8x128xf32, #tpu.memory_space<vmem>>, vector<1x8x128xf32>
    %91 = vector.shape_cast %90 : vector<1x8x128xf32> to vector<8x128xf32>
    %c1_37 = arith.constant 1 : index
    %c0_38 = arith.constant 0 : index
    %c0_39 = arith.constant 0 : index
    %92 = vector.load %arg3[%c1_37, %c0_38, %c0_39] : memref<4x128x128xbf16, #tpu.memory_space<vmem>>, vector<1x128x128xbf16>
    %93 = vector.shape_cast %92 : vector<1x128x128xbf16> to vector<128x128xbf16>
    %94 = vector.extract_strided_slice %91 {offsets = [0, 0], sizes = [1, 128], strides = [1, 1]} : vector<8x128xf32> to vector<1x128xf32>
    %95 = arith.truncf %7 : vector<8x128xf32> to vector<8x128xbf16>
    %cst_40 = arith.constant dense<0.000000e+00> : vector<8x128xf32>
    %96 = tpu.matmul %95, %93, %cst_40 {dimension_numbers = #tpu.dot_dimension_numbers<[1], [1], [0], [0], [0, 0, 1, 0], [], []>} : vector<8x128xbf16>, vector<128x128xbf16>, vector<8x128xf32> -> vector<8x128xf32>
    %97 = vector.broadcast %94 : vector<1x128xf32> to vector<8x128xf32>
    %98 = arith.addf %96, %97 : vector<8x128xf32>
    %99 = arith.addf %89, %98 : vector<8x128xf32>
    %100 = vector.extract_strided_slice %91 {offsets = [1, 0], sizes = [1, 128], strides = [1, 1]} : vector<8x128xf32> to vector<1x128xf32>
    %101 = vector.extract_strided_slice %91 {offsets = [2, 0], sizes = [1, 128], strides = [1, 1]} : vector<8x128xf32> to vector<1x128xf32>
    %cst_41 = arith.constant dense<0.000000e+00> : vector<8xf32>
    %102 = vector.multi_reduction <add>, %99, %cst_41 [1] : vector<8x128xf32> to vector<8xf32>
    %103 = vector.shape_cast %102 : vector<8xf32> to vector<8x1xf32>
    %cst_42 = arith.constant 1.280000e+02 : f32
    %104 = vector.broadcast %cst_42 : f32 to vector<8x1xf32>
    %105 = arith.divf %103, %104 : vector<8x1xf32>
    %106 = vector.broadcast %105 : vector<8x1xf32> to vector<8x128xf32>
    %107 = arith.subf %99, %106 : vector<8x128xf32>
    %108 = arith.mulf %107, %107 : vector<8x128xf32>
    %cst_43 = arith.constant dense<0.000000e+00> : vector<8xf32>
    %109 = vector.multi_reduction <add>, %108, %cst_43 [1] : vector<8x128xf32> to vector<8xf32>
    %110 = vector.shape_cast %109 : vector<8xf32> to vector<8x1xf32>
    %cst_44 = arith.constant 1.280000e+02 : f32
    %111 = vector.broadcast %cst_44 : f32 to vector<8x1xf32>
    %112 = arith.divf %110, %111 : vector<8x1xf32>
    %113 = vector.broadcast %105 : vector<8x1xf32> to vector<8x128xf32>
    %114 = arith.subf %99, %113 : vector<8x128xf32>
    %cst_45 = arith.constant 9.99999974E-6 : f32
    %115 = vector.broadcast %cst_45 : f32 to vector<8x1xf32>
    %116 = arith.addf %112, %115 : vector<8x1xf32>
    %117 = math.rsqrt %116 : vector<8x1xf32>
    %118 = vector.broadcast %117 : vector<8x1xf32> to vector<8x128xf32>
    %119 = arith.mulf %114, %118 : vector<8x128xf32>
    %120 = vector.broadcast %100 : vector<1x128xf32> to vector<8x128xf32>
    %121 = arith.mulf %119, %120 : vector<8x128xf32>
    %122 = vector.broadcast %101 : vector<1x128xf32> to vector<8x128xf32>
    %123 = arith.addf %121, %122 : vector<8x128xf32>
    %c1_46 = arith.constant 1 : index
    %c0_47 = arith.constant 0 : index
    %c0_48 = arith.constant 0 : index
    %124 = vector.load %arg4[%c1_46, %c0_47, %c0_48] : memref<4x256x128xbf16, #tpu.memory_space<vmem>>, vector<1x256x128xbf16>
    %125 = vector.shape_cast %124 : vector<1x256x128xbf16> to vector<256x128xbf16>
    %c1_49 = arith.constant 1 : index
    %c0_50 = arith.constant 0 : index
    %c0_51 = arith.constant 0 : index
    %126 = vector.load %arg5[%c1_49, %c0_50, %c0_51] : memref<4x1x256xf32, #tpu.memory_space<vmem>>, vector<1x1x256xf32>
    %127 = vector.shape_cast %126 : vector<1x1x256xf32> to vector<1x256xf32>
    %128 = arith.truncf %123 : vector<8x128xf32> to vector<8x128xbf16>
    %cst_52 = arith.constant dense<0.000000e+00> : vector<8x256xf32>
    %129 = tpu.matmul %128, %125, %cst_52 {dimension_numbers = #tpu.dot_dimension_numbers<[1], [1], [0], [0], [0, 0, 1, 0], [], []>} : vector<8x128xbf16>, vector<256x128xbf16>, vector<8x256xf32> -> vector<8x256xf32>
    %130 = vector.broadcast %127 : vector<1x256xf32> to vector<8x256xf32>
    %131 = arith.addf %129, %130 : vector<8x256xf32>
    %cst_53 = arith.constant 5.000000e-01 : f32
    %132 = vector.broadcast %cst_53 : f32 to vector<8x256xf32>
    %133 = arith.mulf %132, %131 : vector<8x256xf32>
    %cst_54 = arith.constant 0.707106769 : f32
    %134 = vector.broadcast %cst_54 : f32 to vector<8x256xf32>
    %135 = arith.mulf %131, %134 : vector<8x256xf32>
    %136 = math.erf %135 : vector<8x256xf32>
    %cst_55 = arith.constant 1.000000e+00 : f32
    %137 = vector.broadcast %cst_55 : f32 to vector<8x256xf32>
    %138 = arith.addf %137, %136 : vector<8x256xf32>
    %139 = arith.mulf %133, %138 : vector<8x256xf32>
    %c1_56 = arith.constant 1 : index
    %c0_57 = arith.constant 0 : index
    %c0_58 = arith.constant 0 : index
    %140 = vector.load %arg6[%c1_56, %c0_57, %c0_58] : memref<4x128x256xbf16, #tpu.memory_space<vmem>>, vector<1x128x256xbf16>
    %141 = vector.shape_cast %140 : vector<1x128x256xbf16> to vector<128x256xbf16>
    %142 = vector.extract_strided_slice %91 {offsets = [5, 0], sizes = [1, 128], strides = [1, 1]} : vector<8x128xf32> to vector<1x128xf32>
    %143 = arith.truncf %139 : vector<8x256xf32> to vector<8x256xbf16>
    %cst_59 = arith.constant dense<0.000000e+00> : vector<8x128xf32>
    %144 = tpu.matmul %143, %141, %cst_59 {dimension_numbers = #tpu.dot_dimension_numbers<[1], [1], [0], [0], [0, 0, 1, 0], [], []>} : vector<8x256xbf16>, vector<128x256xbf16>, vector<8x128xf32> -> vector<8x128xf32>
    %145 = vector.broadcast %142 : vector<1x128xf32> to vector<8x128xf32>
    %146 = arith.addf %144, %145 : vector<8x128xf32>
    %147 = arith.addf %123, %146 : vector<8x128xf32>
    %148 = vector.extract_strided_slice %91 {offsets = [3, 0], sizes = [1, 128], strides = [1, 1]} : vector<8x128xf32> to vector<1x128xf32>
    %149 = vector.extract_strided_slice %91 {offsets = [4, 0], sizes = [1, 128], strides = [1, 1]} : vector<8x128xf32> to vector<1x128xf32>
    %cst_60 = arith.constant dense<0.000000e+00> : vector<8xf32>
    %150 = vector.multi_reduction <add>, %147, %cst_60 [1] : vector<8x128xf32> to vector<8xf32>
    %151 = vector.shape_cast %150 : vector<8xf32> to vector<8x1xf32>
    %cst_61 = arith.constant 1.280000e+02 : f32
    %152 = vector.broadcast %cst_61 : f32 to vector<8x1xf32>
    %153 = arith.divf %151, %152 : vector<8x1xf32>
    %154 = vector.broadcast %153 : vector<8x1xf32> to vector<8x128xf32>
    %155 = arith.subf %147, %154 : vector<8x128xf32>
    %156 = arith.mulf %155, %155 : vector<8x128xf32>
    %cst_62 = arith.constant dense<0.000000e+00> : vector<8xf32>
    %157 = vector.multi_reduction <add>, %156, %cst_62 [1] : vector<8x128xf32> to vector<8xf32>
    %158 = vector.shape_cast %157 : vector<8xf32> to vector<8x1xf32>
    %cst_63 = arith.constant 1.280000e+02 : f32
    %159 = vector.broadcast %cst_63 : f32 to vector<8x1xf32>
    %160 = arith.divf %158, %159 : vector<8x1xf32>
    %161 = vector.broadcast %153 : vector<8x1xf32> to vector<8x128xf32>
    %162 = arith.subf %147, %161 : vector<8x128xf32>
    %cst_64 = arith.constant 9.99999974E-6 : f32
    %163 = vector.broadcast %cst_64 : f32 to vector<8x1xf32>
    %164 = arith.addf %160, %163 : vector<8x1xf32>
    %165 = math.rsqrt %164 : vector<8x1xf32>
    %166 = vector.broadcast %165 : vector<8x1xf32> to vector<8x128xf32>
    %167 = arith.mulf %162, %166 : vector<8x128xf32>
    %168 = vector.broadcast %148 : vector<1x128xf32> to vector<8x128xf32>
    %169 = arith.mulf %167, %168 : vector<8x128xf32>
    %170 = vector.broadcast %149 : vector<1x128xf32> to vector<8x128xf32>
    %171 = arith.addf %169, %170 : vector<8x128xf32>
    %c2 = arith.constant 2 : index
    %c0_65 = arith.constant 0 : index
    %c0_66 = arith.constant 0 : index
    %172 = vector.load %arg7[%c2, %c0_65, %c0_66] : memref<4x8x128xf32, #tpu.memory_space<vmem>>, vector<1x8x128xf32>
    %173 = vector.shape_cast %172 : vector<1x8x128xf32> to vector<8x128xf32>
    %c2_67 = arith.constant 2 : index
    %c0_68 = arith.constant 0 : index
    %c0_69 = arith.constant 0 : index
    %174 = vector.load %arg3[%c2_67, %c0_68, %c0_69] : memref<4x128x128xbf16, #tpu.memory_space<vmem>>, vector<1x128x128xbf16>
    %175 = vector.shape_cast %174 : vector<1x128x128xbf16> to vector<128x128xbf16>
    %176 = vector.extract_strided_slice %173 {offsets = [0, 0], sizes = [1, 128], strides = [1, 1]} : vector<8x128xf32> to vector<1x128xf32>
    %177 = arith.truncf %7 : vector<8x128xf32> to vector<8x128xbf16>
    %cst_70 = arith.constant dense<0.000000e+00> : vector<8x128xf32>
    %178 = tpu.matmul %177, %175, %cst_70 {dimension_numbers = #tpu.dot_dimension_numbers<[1], [1], [0], [0], [0, 0, 1, 0], [], []>} : vector<8x128xbf16>, vector<128x128xbf16>, vector<8x128xf32> -> vector<8x128xf32>
    %179 = vector.broadcast %176 : vector<1x128xf32> to vector<8x128xf32>
    %180 = arith.addf %178, %179 : vector<8x128xf32>
    %181 = arith.addf %171, %180 : vector<8x128xf32>
    %182 = vector.extract_strided_slice %173 {offsets = [1, 0], sizes = [1, 128], strides = [1, 1]} : vector<8x128xf32> to vector<1x128xf32>
    %183 = vector.extract_strided_slice %173 {offsets = [2, 0], sizes = [1, 128], strides = [1, 1]} : vector<8x128xf32> to vector<1x128xf32>
    %cst_71 = arith.constant dense<0.000000e+00> : vector<8xf32>
    %184 = vector.multi_reduction <add>, %181, %cst_71 [1] : vector<8x128xf32> to vector<8xf32>
    %185 = vector.shape_cast %184 : vector<8xf32> to vector<8x1xf32>
    %cst_72 = arith.constant 1.280000e+02 : f32
    %186 = vector.broadcast %cst_72 : f32 to vector<8x1xf32>
    %187 = arith.divf %185, %186 : vector<8x1xf32>
    %188 = vector.broadcast %187 : vector<8x1xf32> to vector<8x128xf32>
    %189 = arith.subf %181, %188 : vector<8x128xf32>
    %190 = arith.mulf %189, %189 : vector<8x128xf32>
    %cst_73 = arith.constant dense<0.000000e+00> : vector<8xf32>
    %191 = vector.multi_reduction <add>, %190, %cst_73 [1] : vector<8x128xf32> to vector<8xf32>
    %192 = vector.shape_cast %191 : vector<8xf32> to vector<8x1xf32>
    %cst_74 = arith.constant 1.280000e+02 : f32
    %193 = vector.broadcast %cst_74 : f32 to vector<8x1xf32>
    %194 = arith.divf %192, %193 : vector<8x1xf32>
    %195 = vector.broadcast %187 : vector<8x1xf32> to vector<8x128xf32>
    %196 = arith.subf %181, %195 : vector<8x128xf32>
    %cst_75 = arith.constant 9.99999974E-6 : f32
    %197 = vector.broadcast %cst_75 : f32 to vector<8x1xf32>
    %198 = arith.addf %194, %197 : vector<8x1xf32>
    %199 = math.rsqrt %198 : vector<8x1xf32>
    %200 = vector.broadcast %199 : vector<8x1xf32> to vector<8x128xf32>
    %201 = arith.mulf %196, %200 : vector<8x128xf32>
    %202 = vector.broadcast %182 : vector<1x128xf32> to vector<8x128xf32>
    %203 = arith.mulf %201, %202 : vector<8x128xf32>
    %204 = vector.broadcast %183 : vector<1x128xf32> to vector<8x128xf32>
    %205 = arith.addf %203, %204 : vector<8x128xf32>
    %c2_76 = arith.constant 2 : index
    %c0_77 = arith.constant 0 : index
    %c0_78 = arith.constant 0 : index
    %206 = vector.load %arg4[%c2_76, %c0_77, %c0_78] : memref<4x256x128xbf16, #tpu.memory_space<vmem>>, vector<1x256x128xbf16>
    %207 = vector.shape_cast %206 : vector<1x256x128xbf16> to vector<256x128xbf16>
    %c2_79 = arith.constant 2 : index
    %c0_80 = arith.constant 0 : index
    %c0_81 = arith.constant 0 : index
    %208 = vector.load %arg5[%c2_79, %c0_80, %c0_81] : memref<4x1x256xf32, #tpu.memory_space<vmem>>, vector<1x1x256xf32>
    %209 = vector.shape_cast %208 : vector<1x1x256xf32> to vector<1x256xf32>
    %210 = arith.truncf %205 : vector<8x128xf32> to vector<8x128xbf16>
    %cst_82 = arith.constant dense<0.000000e+00> : vector<8x256xf32>
    %211 = tpu.matmul %210, %207, %cst_82 {dimension_numbers = #tpu.dot_dimension_numbers<[1], [1], [0], [0], [0, 0, 1, 0], [], []>} : vector<8x128xbf16>, vector<256x128xbf16>, vector<8x256xf32> -> vector<8x256xf32>
    %212 = vector.broadcast %209 : vector<1x256xf32> to vector<8x256xf32>
    %213 = arith.addf %211, %212 : vector<8x256xf32>
    %cst_83 = arith.constant 5.000000e-01 : f32
    %214 = vector.broadcast %cst_83 : f32 to vector<8x256xf32>
    %215 = arith.mulf %214, %213 : vector<8x256xf32>
    %cst_84 = arith.constant 0.707106769 : f32
    %216 = vector.broadcast %cst_84 : f32 to vector<8x256xf32>
    %217 = arith.mulf %213, %216 : vector<8x256xf32>
    %218 = math.erf %217 : vector<8x256xf32>
    %cst_85 = arith.constant 1.000000e+00 : f32
    %219 = vector.broadcast %cst_85 : f32 to vector<8x256xf32>
    %220 = arith.addf %219, %218 : vector<8x256xf32>
    %221 = arith.mulf %215, %220 : vector<8x256xf32>
    %c2_86 = arith.constant 2 : index
    %c0_87 = arith.constant 0 : index
    %c0_88 = arith.constant 0 : index
    %222 = vector.load %arg6[%c2_86, %c0_87, %c0_88] : memref<4x128x256xbf16, #tpu.memory_space<vmem>>, vector<1x128x256xbf16>
    %223 = vector.shape_cast %222 : vector<1x128x256xbf16> to vector<128x256xbf16>
    %224 = vector.extract_strided_slice %173 {offsets = [5, 0], sizes = [1, 128], strides = [1, 1]} : vector<8x128xf32> to vector<1x128xf32>
    %225 = arith.truncf %221 : vector<8x256xf32> to vector<8x256xbf16>
    %cst_89 = arith.constant dense<0.000000e+00> : vector<8x128xf32>
    %226 = tpu.matmul %225, %223, %cst_89 {dimension_numbers = #tpu.dot_dimension_numbers<[1], [1], [0], [0], [0, 0, 1, 0], [], []>} : vector<8x256xbf16>, vector<128x256xbf16>, vector<8x128xf32> -> vector<8x128xf32>
    %227 = vector.broadcast %224 : vector<1x128xf32> to vector<8x128xf32>
    %228 = arith.addf %226, %227 : vector<8x128xf32>
    %229 = arith.addf %205, %228 : vector<8x128xf32>
    %230 = vector.extract_strided_slice %173 {offsets = [3, 0], sizes = [1, 128], strides = [1, 1]} : vector<8x128xf32> to vector<1x128xf32>
    %231 = vector.extract_strided_slice %173 {offsets = [4, 0], sizes = [1, 128], strides = [1, 1]} : vector<8x128xf32> to vector<1x128xf32>
    %cst_90 = arith.constant dense<0.000000e+00> : vector<8xf32>
    %232 = vector.multi_reduction <add>, %229, %cst_90 [1] : vector<8x128xf32> to vector<8xf32>
    %233 = vector.shape_cast %232 : vector<8xf32> to vector<8x1xf32>
    %cst_91 = arith.constant 1.280000e+02 : f32
    %234 = vector.broadcast %cst_91 : f32 to vector<8x1xf32>
    %235 = arith.divf %233, %234 : vector<8x1xf32>
    %236 = vector.broadcast %235 : vector<8x1xf32> to vector<8x128xf32>
    %237 = arith.subf %229, %236 : vector<8x128xf32>
    %238 = arith.mulf %237, %237 : vector<8x128xf32>
    %cst_92 = arith.constant dense<0.000000e+00> : vector<8xf32>
    %239 = vector.multi_reduction <add>, %238, %cst_92 [1] : vector<8x128xf32> to vector<8xf32>
    %240 = vector.shape_cast %239 : vector<8xf32> to vector<8x1xf32>
    %cst_93 = arith.constant 1.280000e+02 : f32
    %241 = vector.broadcast %cst_93 : f32 to vector<8x1xf32>
    %242 = arith.divf %240, %241 : vector<8x1xf32>
    %243 = vector.broadcast %235 : vector<8x1xf32> to vector<8x128xf32>
    %244 = arith.subf %229, %243 : vector<8x128xf32>
    %cst_94 = arith.constant 9.99999974E-6 : f32
    %245 = vector.broadcast %cst_94 : f32 to vector<8x1xf32>
    %246 = arith.addf %242, %245 : vector<8x1xf32>
    %247 = math.rsqrt %246 : vector<8x1xf32>
    %248 = vector.broadcast %247 : vector<8x1xf32> to vector<8x128xf32>
    %249 = arith.mulf %244, %248 : vector<8x128xf32>
    %250 = vector.broadcast %230 : vector<1x128xf32> to vector<8x128xf32>
    %251 = arith.mulf %249, %250 : vector<8x128xf32>
    %252 = vector.broadcast %231 : vector<1x128xf32> to vector<8x128xf32>
    %253 = arith.addf %251, %252 : vector<8x128xf32>
    %c3 = arith.constant 3 : index
    %c0_95 = arith.constant 0 : index
    %c0_96 = arith.constant 0 : index
    %254 = vector.load %arg7[%c3, %c0_95, %c0_96] : memref<4x8x128xf32, #tpu.memory_space<vmem>>, vector<1x8x128xf32>
    %255 = vector.shape_cast %254 : vector<1x8x128xf32> to vector<8x128xf32>
    %c3_97 = arith.constant 3 : index
    %c0_98 = arith.constant 0 : index
    %c0_99 = arith.constant 0 : index
    %256 = vector.load %arg3[%c3_97, %c0_98, %c0_99] : memref<4x128x128xbf16, #tpu.memory_space<vmem>>, vector<1x128x128xbf16>
    %257 = vector.shape_cast %256 : vector<1x128x128xbf16> to vector<128x128xbf16>
    %258 = vector.extract_strided_slice %255 {offsets = [0, 0], sizes = [1, 128], strides = [1, 1]} : vector<8x128xf32> to vector<1x128xf32>
    %259 = arith.truncf %7 : vector<8x128xf32> to vector<8x128xbf16>
    %cst_100 = arith.constant dense<0.000000e+00> : vector<8x128xf32>
    %260 = tpu.matmul %259, %257, %cst_100 {dimension_numbers = #tpu.dot_dimension_numbers<[1], [1], [0], [0], [0, 0, 1, 0], [], []>} : vector<8x128xbf16>, vector<128x128xbf16>, vector<8x128xf32> -> vector<8x128xf32>
    %261 = vector.broadcast %258 : vector<1x128xf32> to vector<8x128xf32>
    %262 = arith.addf %260, %261 : vector<8x128xf32>
    %263 = arith.addf %253, %262 : vector<8x128xf32>
    %264 = vector.extract_strided_slice %255 {offsets = [1, 0], sizes = [1, 128], strides = [1, 1]} : vector<8x128xf32> to vector<1x128xf32>
    %265 = vector.extract_strided_slice %255 {offsets = [2, 0], sizes = [1, 128], strides = [1, 1]} : vector<8x128xf32> to vector<1x128xf32>
    %cst_101 = arith.constant dense<0.000000e+00> : vector<8xf32>
    %266 = vector.multi_reduction <add>, %263, %cst_101 [1] : vector<8x128xf32> to vector<8xf32>
    %267 = vector.shape_cast %266 : vector<8xf32> to vector<8x1xf32>
    %cst_102 = arith.constant 1.280000e+02 : f32
    %268 = vector.broadcast %cst_102 : f32 to vector<8x1xf32>
    %269 = arith.divf %267, %268 : vector<8x1xf32>
    %270 = vector.broadcast %269 : vector<8x1xf32> to vector<8x128xf32>
    %271 = arith.subf %263, %270 : vector<8x128xf32>
    %272 = arith.mulf %271, %271 : vector<8x128xf32>
    %cst_103 = arith.constant dense<0.000000e+00> : vector<8xf32>
    %273 = vector.multi_reduction <add>, %272, %cst_103 [1] : vector<8x128xf32> to vector<8xf32>
    %274 = vector.shape_cast %273 : vector<8xf32> to vector<8x1xf32>
    %cst_104 = arith.constant 1.280000e+02 : f32
    %275 = vector.broadcast %cst_104 : f32 to vector<8x1xf32>
    %276 = arith.divf %274, %275 : vector<8x1xf32>
    %277 = vector.broadcast %269 : vector<8x1xf32> to vector<8x128xf32>
    %278 = arith.subf %263, %277 : vector<8x128xf32>
    %cst_105 = arith.constant 9.99999974E-6 : f32
    %279 = vector.broadcast %cst_105 : f32 to vector<8x1xf32>
    %280 = arith.addf %276, %279 : vector<8x1xf32>
    %281 = math.rsqrt %280 : vector<8x1xf32>
    %282 = vector.broadcast %281 : vector<8x1xf32> to vector<8x128xf32>
    %283 = arith.mulf %278, %282 : vector<8x128xf32>
    %284 = vector.broadcast %264 : vector<1x128xf32> to vector<8x128xf32>
    %285 = arith.mulf %283, %284 : vector<8x128xf32>
    %286 = vector.broadcast %265 : vector<1x128xf32> to vector<8x128xf32>
    %287 = arith.addf %285, %286 : vector<8x128xf32>
    %c3_106 = arith.constant 3 : index
    %c0_107 = arith.constant 0 : index
    %c0_108 = arith.constant 0 : index
    %288 = vector.load %arg4[%c3_106, %c0_107, %c0_108] : memref<4x256x128xbf16, #tpu.memory_space<vmem>>, vector<1x256x128xbf16>
    %289 = vector.shape_cast %288 : vector<1x256x128xbf16> to vector<256x128xbf16>
    %c3_109 = arith.constant 3 : index
    %c0_110 = arith.constant 0 : index
    %c0_111 = arith.constant 0 : index
    %290 = vector.load %arg5[%c3_109, %c0_110, %c0_111] : memref<4x1x256xf32, #tpu.memory_space<vmem>>, vector<1x1x256xf32>
    %291 = vector.shape_cast %290 : vector<1x1x256xf32> to vector<1x256xf32>
    %292 = arith.truncf %287 : vector<8x128xf32> to vector<8x128xbf16>
    %cst_112 = arith.constant dense<0.000000e+00> : vector<8x256xf32>
    %293 = tpu.matmul %292, %289, %cst_112 {dimension_numbers = #tpu.dot_dimension_numbers<[1], [1], [0], [0], [0, 0, 1, 0], [], []>} : vector<8x128xbf16>, vector<256x128xbf16>, vector<8x256xf32> -> vector<8x256xf32>
    %294 = vector.broadcast %291 : vector<1x256xf32> to vector<8x256xf32>
    %295 = arith.addf %293, %294 : vector<8x256xf32>
    %cst_113 = arith.constant 5.000000e-01 : f32
    %296 = vector.broadcast %cst_113 : f32 to vector<8x256xf32>
    %297 = arith.mulf %296, %295 : vector<8x256xf32>
    %cst_114 = arith.constant 0.707106769 : f32
    %298 = vector.broadcast %cst_114 : f32 to vector<8x256xf32>
    %299 = arith.mulf %295, %298 : vector<8x256xf32>
    %300 = math.erf %299 : vector<8x256xf32>
    %cst_115 = arith.constant 1.000000e+00 : f32
    %301 = vector.broadcast %cst_115 : f32 to vector<8x256xf32>
    %302 = arith.addf %301, %300 : vector<8x256xf32>
    %303 = arith.mulf %297, %302 : vector<8x256xf32>
    %c3_116 = arith.constant 3 : index
    %c0_117 = arith.constant 0 : index
    %c0_118 = arith.constant 0 : index
    %304 = vector.load %arg6[%c3_116, %c0_117, %c0_118] : memref<4x128x256xbf16, #tpu.memory_space<vmem>>, vector<1x128x256xbf16>
    %305 = vector.shape_cast %304 : vector<1x128x256xbf16> to vector<128x256xbf16>
    %306 = vector.extract_strided_slice %255 {offsets = [5, 0], sizes = [1, 128], strides = [1, 1]} : vector<8x128xf32> to vector<1x128xf32>
    %307 = arith.truncf %303 : vector<8x256xf32> to vector<8x256xbf16>
    %cst_119 = arith.constant dense<0.000000e+00> : vector<8x128xf32>
    %308 = tpu.matmul %307, %305, %cst_119 {dimension_numbers = #tpu.dot_dimension_numbers<[1], [1], [0], [0], [0, 0, 1, 0], [], []>} : vector<8x256xbf16>, vector<128x256xbf16>, vector<8x128xf32> -> vector<8x128xf32>
    %309 = vector.broadcast %306 : vector<1x128xf32> to vector<8x128xf32>
    %310 = arith.addf %308, %309 : vector<8x128xf32>
    %311 = arith.addf %287, %310 : vector<8x128xf32>
    %312 = vector.extract_strided_slice %255 {offsets = [3, 0], sizes = [1, 128], strides = [1, 1]} : vector<8x128xf32> to vector<1x128xf32>
    %313 = vector.extract_strided_slice %255 {offsets = [4, 0], sizes = [1, 128], strides = [1, 1]} : vector<8x128xf32> to vector<1x128xf32>
    %cst_120 = arith.constant dense<0.000000e+00> : vector<8xf32>
    %314 = vector.multi_reduction <add>, %311, %cst_120 [1] : vector<8x128xf32> to vector<8xf32>
    %315 = vector.shape_cast %314 : vector<8xf32> to vector<8x1xf32>
    %cst_121 = arith.constant 1.280000e+02 : f32
    %316 = vector.broadcast %cst_121 : f32 to vector<8x1xf32>
    %317 = arith.divf %315, %316 : vector<8x1xf32>
    %318 = vector.broadcast %317 : vector<8x1xf32> to vector<8x128xf32>
    %319 = arith.subf %311, %318 : vector<8x128xf32>
    %320 = arith.mulf %319, %319 : vector<8x128xf32>
    %cst_122 = arith.constant dense<0.000000e+00> : vector<8xf32>
    %321 = vector.multi_reduction <add>, %320, %cst_122 [1] : vector<8x128xf32> to vector<8xf32>
    %322 = vector.shape_cast %321 : vector<8xf32> to vector<8x1xf32>
    %cst_123 = arith.constant 1.280000e+02 : f32
    %323 = vector.broadcast %cst_123 : f32 to vector<8x1xf32>
    %324 = arith.divf %322, %323 : vector<8x1xf32>
    %325 = vector.broadcast %317 : vector<8x1xf32> to vector<8x128xf32>
    %326 = arith.subf %311, %325 : vector<8x128xf32>
    %cst_124 = arith.constant 9.99999974E-6 : f32
    %327 = vector.broadcast %cst_124 : f32 to vector<8x1xf32>
    %328 = arith.addf %324, %327 : vector<8x1xf32>
    %329 = math.rsqrt %328 : vector<8x1xf32>
    %330 = vector.broadcast %329 : vector<8x1xf32> to vector<8x128xf32>
    %331 = arith.mulf %326, %330 : vector<8x128xf32>
    %332 = vector.broadcast %312 : vector<1x128xf32> to vector<8x128xf32>
    %333 = arith.mulf %331, %332 : vector<8x128xf32>
    %334 = vector.broadcast %313 : vector<1x128xf32> to vector<8x128xf32>
    %335 = arith.addf %333, %334 : vector<8x128xf32>
    %336 = vector.extract_strided_slice %0 {offsets = [0, 0], sizes = [1, 128], strides = [1, 1]} : vector<8x128xf32> to vector<1x128xf32>
    %337 = vector.extract_strided_slice %0 {offsets = [1, 0], sizes = [1, 128], strides = [1, 1]} : vector<8x128xf32> to vector<1x128xf32>
    %cst_125 = arith.constant dense<0.000000e+00> : vector<8xf32>
    %338 = vector.multi_reduction <add>, %335, %cst_125 [1] : vector<8x128xf32> to vector<8xf32>
    %339 = vector.shape_cast %338 : vector<8xf32> to vector<8x1xf32>
    %cst_126 = arith.constant 1.280000e+02 : f32
    %340 = vector.broadcast %cst_126 : f32 to vector<8x1xf32>
    %341 = arith.divf %339, %340 : vector<8x1xf32>
    %342 = vector.broadcast %341 : vector<8x1xf32> to vector<8x128xf32>
    %343 = arith.subf %335, %342 : vector<8x128xf32>
    %344 = arith.mulf %343, %343 : vector<8x128xf32>
    %cst_127 = arith.constant dense<0.000000e+00> : vector<8xf32>
    %345 = vector.multi_reduction <add>, %344, %cst_127 [1] : vector<8x128xf32> to vector<8xf32>
    %346 = vector.shape_cast %345 : vector<8xf32> to vector<8x1xf32>
    %cst_128 = arith.constant 1.280000e+02 : f32
    %347 = vector.broadcast %cst_128 : f32 to vector<8x1xf32>
    %348 = arith.divf %346, %347 : vector<8x1xf32>
    %349 = vector.broadcast %341 : vector<8x1xf32> to vector<8x128xf32>
    %350 = arith.subf %335, %349 : vector<8x128xf32>
    %cst_129 = arith.constant 9.99999974E-6 : f32
    %351 = vector.broadcast %cst_129 : f32 to vector<8x1xf32>
    %352 = arith.addf %348, %351 : vector<8x1xf32>
    %353 = math.rsqrt %352 : vector<8x1xf32>
    %354 = vector.broadcast %353 : vector<8x1xf32> to vector<8x128xf32>
    %355 = arith.mulf %350, %354 : vector<8x128xf32>
    %356 = vector.broadcast %336 : vector<1x128xf32> to vector<8x128xf32>
    %357 = arith.mulf %355, %356 : vector<8x128xf32>
    %358 = vector.broadcast %337 : vector<1x128xf32> to vector<8x128xf32>
    %359 = arith.addf %357, %358 : vector<8x128xf32>
    %c0_130 = arith.constant 0 : index
    %c0_131 = arith.constant 0 : index
    %360 = vector.load %arg8[%c0_130, %c0_131] : memref<128x128xbf16, #tpu.memory_space<vmem>>, vector<128x128xbf16>
    %361 = vector.extract_strided_slice %0 {offsets = [2, 0], sizes = [1, 128], strides = [1, 1]} : vector<8x128xf32> to vector<1x128xf32>
    %362 = arith.truncf %359 : vector<8x128xf32> to vector<8x128xbf16>
    %cst_132 = arith.constant dense<0.000000e+00> : vector<8x128xf32>
    %363 = tpu.matmul %362, %360, %cst_132 {dimension_numbers = #tpu.dot_dimension_numbers<[1], [1], [0], [0], [0, 0, 1, 0], [], []>} : vector<8x128xbf16>, vector<128x128xbf16>, vector<8x128xf32> -> vector<8x128xf32>
    %364 = vector.broadcast %361 : vector<1x128xf32> to vector<8x128xf32>
    %365 = arith.addf %363, %364 : vector<8x128xf32>
    %c0_133 = arith.constant 0 : index
    %c0_134 = arith.constant 0 : index
    %366 = vector.load %arg10[%c0_133, %c0_134] : memref<8x128xf32, #tpu.memory_space<vmem>>, vector<8x128xf32>
    tpu.vector_store %arg10[%c0_133, %c0_134], %365 {strides = array<i32>} : memref<8x128xf32, #tpu.memory_space<vmem>>, vector<8x128xf32>,
    return
  }
  func.func @transform_0(%arg0: i32) -> (i32, i32) {
    %c0_i32 = arith.constant 0 : i32
    %c0_i32_0 = arith.constant 0 : i32
    return %arg0, %c0_i32 : i32, i32
  }
  func.func @transform_1(%arg0: i32) -> (i32, i32) {
    %c0_i32 = arith.constant 0 : i32
    %c0_i32_0 = arith.constant 0 : i32
    return %arg0, %c0_i32 : i32, i32
  }
  func.func @transform_2(%arg0: i32) -> (i32, i32, i32) {
    %c0_i32 = arith.constant 0 : i32
    %c0_i32_0 = arith.constant 0 : i32
    %c0_i32_1 = arith.constant 0 : i32
    %c0_i32_2 = arith.constant 0 : i32
    return %c0_i32, %c0_i32_0, %c0_i32_1 : i32, i32, i32
  }
  func.func @transform_3(%arg0: i32) -> (i32, i32, i32) {
    %c0_i32 = arith.constant 0 : i32
    %c0_i32_0 = arith.constant 0 : i32
    %c0_i32_1 = arith.constant 0 : i32
    %c0_i32_2 = arith.constant 0 : i32
    return %c0_i32, %c0_i32_0, %c0_i32_1 : i32, i32, i32
  }
  func.func @transform_4(%arg0: i32) -> (i32, i32, i32) {
    %c0_i32 = arith.constant 0 : i32
    %c0_i32_0 = arith.constant 0 : i32
    %c0_i32_1 = arith.constant 0 : i32
    %c0_i32_2 = arith.constant 0 : i32
    return %c0_i32, %c0_i32_0, %c0_i32_1 : i32, i32, i32
  }
  func.func @transform_5(%arg0: i32) -> (i32, i32, i32) {
    %c0_i32 = arith.constant 0 : i32
    %c0_i32_0 = arith.constant 0 : i32
    %c0_i32_1 = arith.constant 0 : i32
    %c0_i32_2 = arith.constant 0 : i32
    return %c0_i32, %c0_i32_0, %c0_i32_1 : i32, i32, i32
  }
  func.func @transform_6(%arg0: i32) -> (i32, i32, i32) {
    %c0_i32 = arith.constant 0 : i32
    %c0_i32_0 = arith.constant 0 : i32
    %c0_i32_1 = arith.constant 0 : i32
    %c0_i32_2 = arith.constant 0 : i32
    return %c0_i32, %c0_i32_0, %c0_i32_1 : i32, i32, i32
  }
  func.func @transform_7(%arg0: i32) -> (i32, i32) {
    %c0_i32 = arith.constant 0 : i32
    %c0_i32_0 = arith.constant 0 : i32
    %c0_i32_1 = arith.constant 0 : i32
    return %c0_i32, %c0_i32_0 : i32, i32
  }
  func.func @transform_8(%arg0: i32) -> (i32, i32) {
    %c0_i32 = arith.constant 0 : i32
    %c0_i32_0 = arith.constant 0 : i32
    %c0_i32_1 = arith.constant 0 : i32
    return %c0_i32, %c0_i32_0 : i32, i32
  }
  func.func @transform_9(%arg0: i32) -> (i32, i32) {
    %c0_i32 = arith.constant 0 : i32
    %c0_i32_0 = arith.constant 0 : i32
    return %arg0, %c0_i32 : i32, i32
  }
}

</mosaic_0001>

<llo_original>
// kernel: _lambda_.1
$region0: #{_lambda_.1}
  #allocation0 [shape = 'u32[]', space=smem, size = 0x4, offset = 0x4, fixed_abs, tag = 'smem constant byte address 0x4 - core index']
  #allocation1 [shape = 'u32[72,128]{1,0:T(1,128)}', space=vmem, size = 0x9000, scoped, tag = 'internal scratch']
  %s0 = inlined_call_operand.vmem [shape: f32[8,128], index: 0, kind: input, shape index: {}]
  %s1 = inlined_call_operand.vmem [shape: f32[8,128], index: 1, kind: input, shape index: {}]
  %s2 = inlined_call_operand.hbm [shape: bf16[4,128,128], index: 2, kind: input, shape index: {}]
  %s3 = inlined_call_operand.hbm [shape: bf16[4,256,128], index: 3, kind: input, shape index: {}]
  %s4 = inlined_call_operand.vmem [shape: f32[4,1,256], index: 4, kind: input, shape index: {}]
  %s5 = inlined_call_operand.hbm [shape: bf16[4,128,256], index: 5, kind: input, shape index: {}]
  %s6 = inlined_call_operand.hbm [shape: f32[4,8,128], index: 6, kind: input, shape index: {}]
  %s7 = inlined_call_operand.hbm [shape: bf16[128,128], index: 7, kind: input, shape index: {}]
  %s8 = inlined_call_operand.vmem [shape: f32[8,128], index: 8, kind: input, shape index: {}]
  %s9 = inlined_call_operand.vmem [shape: f32[8,128], index: 9, kind: output, shape index: {}]
  %s10 = sld [smem:[#allocation0]]
  $region66: #{_lambda_.1} parent=0
    _
  %s12 = ssub.s32 1, %s10
  %s13 = scalar_select 0, %s12, %s10
  $region1: #{_lambda_.1} parent=0
    #allocation2 [shape = 'u8[131072]{0}', space=vmem, size = 0x20000, scoped, tag = 'input window, operand 2, single buffered']
    #allocation3 [shape = 's32[1]{0}', space=sflag, size = 0x4, scoped, tag = 'scoped memory for _lambda_.1']
    #allocation4 [shape = 'u8[262144]{0}', space=vmem, size = 0x40000, scoped, tag = 'input window, operand 3, single buffered']
    #allocation5 [shape = 's32[1]{0}', space=sflag, size = 0x4, scoped, tag = 'scoped memory for _lambda_.1']
    #allocation6 [shape = 'u8[262144]{0}', space=vmem, size = 0x40000, scoped, tag = 'input window, operand 5, single buffered']
    #allocation7 [shape = 'u8[16384]{0}', space=vmem, size = 0x4000, scoped, tag = 'input window, operand 6, single buffered']
    #allocation8 [shape = 's32[1]{0}', space=sflag, size = 0x4, scoped, tag = 'scoped memory for _lambda_.1']
    #allocation9 [shape = 'u8[32768]{0}', space=vmem, size = 0x8000, scoped, tag = 'input window, operand 7, single buffered']
    %14 = vsyncpa [#allocation3], 0
    %15 = vsyncpa [#allocation5], 0
    %16 = vsyncpa [#allocation8], 0
    // Predicated region
    $region2: #{_lambda_.1} parent=1 // pred_check
      _
    $region3: #{_lambda_.1} parent=1 // pred_check_branch
      %18 = sbr.rel (0) target = $region5
    $region4: #{_lambda_.1} parent=1 // pred_region
      _
    $region5: #{_lambda_.1} parent=1 // pred_fallthru
      _
    // Predicated region
    $region6: #{_lambda_.1} parent=1 // pred_check
      _
    $region7: #{_lambda_.1} parent=1 // pred_check_branch
      %20 = sbr.rel (0) target = $region9
    $region8: #{_lambda_.1} parent=1 // pred_region
      _
    $region9: #{_lambda_.1} parent=1 // pred_fallthru
      _
    // Predicated region
    $region10: #{_lambda_.1} parent=1 // pred_check
      _
    $region11: #{_lambda_.1} parent=1 // pred_check_branch
      %22 = sbr.rel (0) target = $region13
    $region12: #{_lambda_.1} parent=1 // pred_region
      %24 = vsyncadd [#allocation3], 0
      %s25 = sshll.u32 %s2, 4
      %s26 = int_to_ptr.hbm [resolvable:$true] %s25
      %s27 = sshll.u32 [#allocation2], 4
      %s28 = int_to_ptr.vmem [resolvable:$true] %s27
      %33 = dma.hbm_to_vmem [thread:$0]  %s26, 4096, %s28, [#allocation3], 64, 64, 4
    $region13: #{_lambda_.1} parent=1 // pred_fallthru
      _
    // Predicated region
    $region14: #{_lambda_.1} parent=1 // pred_check
      _
    $region15: #{_lambda_.1} parent=1 // pred_check_branch
      %35 = sbr.rel (0) target = $region17
    $region16: #{_lambda_.1} parent=1 // pred_region
      %37 = vsyncadd [#allocation5], 0
      %s38 = sshll.u32 %s3, 4
      %s39 = int_to_ptr.hbm [resolvable:$true] %s38
      %s40 = sshll.u32 [#allocation4], 4
      %s41 = int_to_ptr.vmem [resolvable:$true] %s40
      %46 = dma.hbm_to_vmem [thread:$0]  %s39, 8192, %s41, [#allocation5], 64, 64, 4
    $region17: #{_lambda_.1} parent=1 // pred_fallthru
      _
    // Predicated region
    $region18: #{_lambda_.1} parent=1 // pred_check
      _
    $region19: #{_lambda_.1} parent=1 // pred_check_branch
      %48 = sbr.rel (0) target = $region21
    $region20: #{_lambda_.1} parent=1 // pred_region
      _
    $region21: #{_lambda_.1} parent=1 // pred_fallthru
      _
    // Predicated region
    $region22: #{_lambda_.1} parent=1 // pred_check
      _
    $region23: #{_lambda_.1} parent=1 // pred_check_branch
      %50 = sbr.rel (0) target = $region25
    $region24: #{_lambda_.1} parent=1 // pred_region
      %52 = vsyncadd [#allocation5], 0
      %s53 = sshll.u32 %s5, 4
      %s54 = int_to_ptr.hbm [resolvable:$true] %s53
      %s55 = sshll.u32 [#allocation6], 4
      %s56 = int_to_ptr.vmem [resolvable:$true] %s55
      %61 = dma.hbm_to_vmem [thread:$0]  %s54, 8192, %s56, [#allocation5], 128, 128, 8
    $region25: #{_lambda_.1} parent=1 // pred_fallthru
      _
    // Predicated region
    $region26: #{_lambda_.1} parent=1 // pred_check
      _
    $region27: #{_lambda_.1} parent=1 // pred_check_branch
      %63 = sbr.rel (0) target = $region29
    $region28: #{_lambda_.1} parent=1 // pred_region
      %65 = vsyncadd [#allocation8], 0
      %s66 = sshll.u32 %s6, 4
      %s67 = int_to_ptr.hbm [resolvable:$true] %s66
      %s68 = sshll.u32 [#allocation7], 4
      %s69 = int_to_ptr.vmem [resolvable:$true] %s68
      %74 = dma.hbm_to_vmem [thread:$0]  %s67, 512, %s69, [#allocation8], 128, 128, 8
    $region29: #{_lambda_.1} parent=1 // pred_fallthru
      _
    // Predicated region
    $region30: #{_lambda_.1} parent=1 // pred_check
      _
    $region31: #{_lambda_.1} parent=1 // pred_check_branch
      %76 = sbr.rel (0) target = $region33
    $region32: #{_lambda_.1} parent=1 // pred_region
      %78 = vsyncadd [#allocation8], 0
      %s79 = sshll.u32 %s7, 4
      %s80 = int_to_ptr.hbm [resolvable:$true] %s79
      %s81 = sshll.u32 [#allocation9], 4
      %s82 = int_to_ptr.vmem [resolvable:$true] %s81
      %87 = dma.hbm_to_vmem [thread:$0]  %s80, 1024, %s82, [#allocation8], 64, 64, 4
    $region33: #{_lambda_.1} parent=1 // pred_fallthru
      _
    // Predicated region
    $region34: #{_lambda_.1} parent=1 // pred_check
      _
    $region35: #{_lambda_.1} parent=1 // pred_check_branch
      %89 = sbr.rel (0) target = $region37
    $region36: #{_lambda_.1} parent=1 // pred_region
      _
    $region37: #{_lambda_.1} parent=1 // pred_fallthru
      _
    // Predicated region
    $region38: #{_lambda_.1} parent=1 // pred_check
      _
    $region39: #{_lambda_.1} parent=1 // pred_check_branch
      %91 = sbr.rel (0) target = $region41
    $region40: #{_lambda_.1} parent=1 // pred_region
      %93 = dma.done [#allocation3], 4096
    $region41: #{_lambda_.1} parent=1 // pred_fallthru
      _
    // Predicated region
    $region42: #{_lambda_.1} parent=1 // pred_check
      _
    $region43: #{_lambda_.1} parent=1 // pred_check_branch
      %95 = sbr.rel (0) target = $region45
    $region44: #{_lambda_.1} parent=1 // pred_region
      %97 = dma.done [#allocation5], 8192
    $region45: #{_lambda_.1} parent=1 // pred_fallthru
      _
    // Predicated region
    $region46: #{_lambda_.1} parent=1 // pred_check
      _
    $region47: #{_lambda_.1} parent=1 // pred_check_branch
      %99 = sbr.rel (0) target = $region49
    $region48: #{_lambda_.1} parent=1 // pred_region
      %101 = dma.done [#allocation5], 8192
    $region49: #{_lambda_.1} parent=1 // pred_fallthru
      _
    // Predicated region
    $region50: #{_lambda_.1} parent=1 // pred_check
      _
    $region51: #{_lambda_.1} parent=1 // pred_check_branch
      %103 = sbr.rel (0) target = $region53
    $region52: #{_lambda_.1} parent=1 // pred_region
      %105 = dma.done [#allocation8], 512
    $region53: #{_lambda_.1} parent=1 // pred_fallthru
      _
    // Predicated region
    $region54: #{_lambda_.1} parent=1 // pred_check
      _
    $region55: #{_lambda_.1} parent=1 // pred_check_branch
      %107 = sbr.rel (0) target = $region57
    $region56: #{_lambda_.1} parent=1 // pred_region
      %109 = dma.done [#allocation8], 1024
    $region57: #{_lambda_.1} parent=1 // pred_fallthru
      _
    %v110 = vld [vmem:[%s8] sm:$0xff]
    %v111 = vld [vmem:[%s0] sm:$0xff]
    %v112 = vperm.slane %v110, 3
    %v113 = vadd.f32 %v111, %v112
    %v114 = vld [vmem:[%s1] sm:$0xff]
    %v115 = vadd.f32 %v114, %v112
    %v116 = vld [vmem:[#allocation7] sm:$0xff]
    %v117 = vld [vmem:[#allocation2] sm:$0xf]
    %v118 = vld [vmem:[#allocation2 + $0x4] sm:$0xf]
    %v119 = vld [vmem:[#allocation2 + $0x8] sm:$0xf]
    %v120 = vld [vmem:[#allocation2 + $0xc] sm:$0xf]
    %v121 = vld [vmem:[#allocation2 + $0x10] sm:$0xf]
    %v122 = vld [vmem:[#allocation2 + $0x14] sm:$0xf]
    %v123 = vld [vmem:[#allocation2 + $0x18] sm:$0xf]
    %v124 = vld [vmem:[#allocation2 + $0x1c] sm:$0xf]
    %v125 = vld [vmem:[#allocation2 + $0x20] sm:$0xf]
    %v126 = vld [vmem:[#allocation2 + $0x24] sm:$0xf]
    %v127 = vld [vmem:[#allocation2 + $0x28] sm:$0xf]
    %v128 = vld [vmem:[#allocation2 + $0x2c] sm:$0xf]
    %v129 = vld [vmem:[#allocation2 + $0x30] sm:$0xf]
    %v130 = vld [vmem:[#allocation2 + $0x34] sm:$0xf]
    %v131 = vld [vmem:[#allocation2 + $0x38] sm:$0xf]
    %v132 = vld [vmem:[#allocation2 + $0x3c] sm:$0xf]
    %v133 = vpack.c.bf16 %v115, %v115
    %v134 = vperm.slane %v116, 0
    %v151 = vunpack.c.l.b16 %v117
    %v152 = vunpack.c.l.b16 %v118
    %v153 = vunpack.c.l.b16 %v119
    %v154 = vunpack.c.l.b16 %v120
    %v155 = vunpack.c.l.b16 %v121
    %v156 = vunpack.c.l.b16 %v122
    %v157 = vunpack.c.l.b16 %v123
    %v158 = vunpack.c.l.b16 %v124
    %v159 = vunpack.c.l.b16 %v125
    %v160 = vunpack.c.l.b16 %v126
    %v161 = vunpack.c.l.b16 %v127
    %v162 = vunpack.c.l.b16 %v128
    %v163 = vunpack.c.l.b16 %v129
    %v164 = vunpack.c.l.b16 %v130
    %v165 = vunpack.c.l.b16 %v131
    %v166 = vunpack.c.l.b16 %v132
    %v167 = vpack.c.b16 %v152, %v151
    %v168 = vpack.c.b16 %v154, %v153
    %v169 = vpack.c.b16 %v156, %v155
    %v170 = vpack.c.b16 %v158, %v157
    %v171 = vpack.c.b16 %v160, %v159
    %v172 = vpack.c.b16 %v162, %v161
    %v173 = vpack.c.b16 %v164, %v163
    %v174 = vpack.c.b16 %v166, %v165
    %183 = vmatpush.bf16.xpose.msra.mxu0 %v174
    %184 = vmatpush.bf16.xpose.msra.mxu0 %v173
    %185 = vmatpush.bf16.xpose.msra.mxu0 %v172
    %186 = vmatpush.bf16.xpose.msra.mxu0 %v171
    %187 = vmatpush.bf16.xpose.msra.mxu0 %v170
    %188 = vmatpush.bf16.xpose.msra.mxu0 %v169
    %189 = vmatpush.bf16.xpose.msra.mxu0 %v168
    %190 = vmatpush.bf16.xpose.msra.mxu0 %v167
    %191 = vmatmul.bf16.gmra.mxu0 %v133
    %v192 = vpop.f32.mrf.mxu0
    %v193 = vadd.f32 %v134, %v192
    %v194 = vpop.f32.mrf.mxu0
    %195 = vdwg.mxu0
    %v196 = vadd.f32 %v113, %v193
    %197 = vadd.xlane.f32.xlu0 %v196
    %v198 = vpop.xlane.xlu0 %197
    %v199 = vrcp.pop 128.0
    %v200 = vmul.f32 128.0, %v199
    %v201 = vsub.f32 1.0, %v200
    %v202 = vmul.f32 %v199, %v201
    %v203 = vadd.f32 %v199, %v202
    %vm204 = vweird.f32 %v199
    %v205 = vsel %vm204, %v199, %v203
    %v206 = vmul.f32 %v198, %v205
    %v207 = vsub.f32 %v196, %v206
    %v208 = vmul.f32 %v207, %v207
    %209 = vadd.xlane.f32.xlu0 %v208
    %v210 = vpop.xlane.xlu0 %209
    %v211 = vmul.f32 %v210, %v205
    %v212 = vadd.f32 %v211, 1e-05
    %v213 = vrsqrt.pop %v212
    %v214 = vmul.f32 %v213, %v212
    %v215 = vmul.f32 %v214, %v213
    %v216 = vmul.f32 0.5, %v215
    %v217 = vsub.f32 1.5, %v216
    %v218 = vmul.f32 %v213, %v217
    %vm219 = vweird.f32 %v212
    %vm220 = vweird.f32 %v213
    %vm221 = vmor %vm219, %vm220
    %v222 = vsel %vm221, %v213, %v218
    %v223 = vmul.f32 %v207, %v222
    %v224 = vperm.slane %v116, 1
    %v225 = vmul.f32 %v223, %v224
    %v226 = vperm.slane %v116, 2
    %v227 = vadd.f32 %v225, %v226
    %v228 = vld [vmem:[#allocation4] sm:$0xf]
    %v229 = vld [vmem:[#allocation4 + $0x4] sm:$0xf]
    %v230 = vld [vmem:[#allocation4 + $0x8] sm:$0xf]
    %v231 = vld [vmem:[#allocation4 + $0xc] sm:$0xf]
    %v232 = vld [vmem:[#allocation4 + $0x10] sm:$0xf]
    %v233 = vld [vmem:[#allocation4 + $0x14] sm:$0xf]
    %v234 = vld [vmem:[#allocation4 + $0x18] sm:$0xf]
    %v235 = vld [vmem:[#allocation4 + $0x1c] sm:$0xf]
    %v236 = vld [vmem:[#allocation4 + $0x20] sm:$0xf]
    %v237 = vld [vmem:[#allocation4 + $0x24] sm:$0xf]
    %v238 = vld [vmem:[#allocation4 + $0x28] sm:$0xf]
    %v239 = vld [vmem:[#allocation4 + $0x2c] sm:$0xf]
    %v240 = vld [vmem:[#allocation4 + $0x30] sm:$0xf]
    %v241 = vld [vmem:[#allocation4 + $0x34] sm:$0xf]
    %v242 = vld [vmem:[#allocation4 + $0x38] sm:$0xf]
    %v243 = vld [vmem:[#allocation4 + $0x3c] sm:$0xf]
    %v244 = vld [vmem:[#allocation4 + $0x40] sm:$0xf]
    %v245 = vld [vmem:[#allocation4 + $0x44] sm:$0xf]
    %v246 = vld [vmem:[#allocation4 + $0x48] sm:$0xf]
    %v247 = vld [vmem:[#allocation4 + $0x4c] sm:$0xf]
    %v248 = vld [vmem:[#allocation4 + $0x50] sm:$0xf]
    %v249 = vld [vmem:[#allocation4 + $0x54] sm:$0xf]
    %v250 = vld [vmem:[#allocation4 + $0x58] sm:$0xf]
    %v251 = vld [vmem:[#allocation4 + $0x5c] sm:$0xf]
    %v252 = vld [vmem:[#allocation4 + $0x60] sm:$0xf]
    %v253 = vld [vmem:[#allocation4 + $0x64] sm:$0xf]
    %v254 = vld [vmem:[#allocation4 + $0x68] sm:$0xf]
    %v255 = vld [vmem:[#allocation4 + $0x6c] sm:$0xf]
    %v256 = vld [vmem:[#allocation4 + $0x70] sm:$0xf]
    %v257 = vld [vmem:[#allocation4 + $0x74] sm:$0xf]
    %v258 = vld [vmem:[#allocation4 + $0x78] sm:$0xf]
    %v259 = vld [vmem:[#allocation4 + $0x7c] sm:$0xf]
    %v260 = vld [vmem:[%s4] sm:$0x3]
    %v261 = vpack.c.bf16 %v227, %v227
    %v263 = vperm.slane %v260, 0
    %v264 = vperm.slane %v260, 1
    %v299 = vunpack.c.l.b16 %v228
    %v300 = vunpack.c.l.b16 %v229
    %v301 = vunpack.c.l.b16 %v230
    %v302 = vunpack.c.l.b16 %v231
    %v303 = vunpack.c.l.b16 %v232
    %v304 = vunpack.c.l.b16 %v233
    %v305 = vunpack.c.l.b16 %v234
    %v306 = vunpack.c.l.b16 %v235
    %v307 = vunpack.c.l.b16 %v236
    %v308 = vunpack.c.l.b16 %v237
    %v309 = vunpack.c.l.b16 %v238
    %v310 = vunpack.c.l.b16 %v239
    %v311 = vunpack.c.l.b16 %v240
    %v312 = vunpack.c.l.b16 %v241
    %v313 = vunpack.c.l.b16 %v242
    %v314 = vunpack.c.l.b16 %v243
    %v315 = vunpack.c.l.b16 %v244
    %v316 = vunpack.c.l.b16 %v245
    %v317 = vunpack.c.l.b16 %v246
    %v318 = vunpack.c.l.b16 %v247
    %v319 = vunpack.c.l.b16 %v248
    %v320 = vunpack.c.l.b16 %v249
    %v321 = vunpack.c.l.b16 %v250
    %v322 = vunpack.c.l.b16 %v251
    %v323 = vunpack.c.l.b16 %v252
    %v324 = vunpack.c.l.b16 %v253
    %v325 = vunpack.c.l.b16 %v254
    %v326 = vunpack.c.l.b16 %v255
    %v327 = vunpack.c.l.b16 %v256
    %v328 = vunpack.c.l.b16 %v257
    %v329 = vunpack.c.l.b16 %v258
    %v330 = vunpack.c.l.b16 %v259
    %v331 = vpack.c.b16 %v300, %v299
    %v332 = vpack.c.b16 %v302, %v301
    %v333 = vpack.c.b16 %v304, %v303
    %v334 = vpack.c.b16 %v306, %v305
    %v335 = vpack.c.b16 %v308, %v307
    %v336 = vpack.c.b16 %v310, %v309
    %v337 = vpack.c.b16 %v312, %v311
    %v338 = vpack.c.b16 %v314, %v313
    %v339 = vpack.c.b16 %v316, %v315
    %v340 = vpack.c.b16 %v318, %v317
    %v341 = vpack.c.b16 %v320, %v319
    %v342 = vpack.c.b16 %v322, %v321
    %v343 = vpack.c.b16 %v324, %v323
    %v344 = vpack.c.b16 %v326, %v325
    %v345 = vpack.c.b16 %v328, %v327
    %v346 = vpack.c.b16 %v330, %v329
    %363 = vmatpush.bf16.xpose.msra.mxu0 %v338
    %364 = vmatpush.bf16.xpose.msra.mxu0 %v337
    %365 = vmatpush.bf16.xpose.msra.mxu0 %v336
    %366 = vmatpush.bf16.xpose.msra.mxu0 %v335
    %367 = vmatpush.bf16.xpose.msra.mxu0 %v334
    %368 = vmatpush.bf16.xpose.msra.mxu0 %v333
    %369 = vmatpush.bf16.xpose.msra.mxu0 %v332
    %370 = vmatpush.bf16.xpose.msra.mxu0 %v331
    %371 = vmatmul.bf16.gmra.mxu0 %v261
    %v372 = vpop.f32.mrf.mxu0
    %v373 = vadd.f32 %v263, %v372
    %v374 = vpop.f32.mrf.mxu0
    %375 = vdwg.mxu0
    %376 = vmatpush.bf16.xpose.msra.mxu0 %v346
    %377 = vmatpush.bf16.xpose.msra.mxu0 %v345
    %378 = vmatpush.bf16.xpose.msra.mxu0 %v344
    %379 = vmatpush.bf16.xpose.msra.mxu0 %v343
    %380 = vmatpush.bf16.xpose.msra.mxu0 %v342
    %381 = vmatpush.bf16.xpose.msra.mxu0 %v341
    %382 = vmatpush.bf16.xpose.msra.mxu0 %v340
    %383 = vmatpush.bf16.xpose.msra.mxu0 %v339
    %384 = vmatmul.bf16.gmra.mxu0 %v261
    %v385 = vpop.f32.mrf.mxu0
    %v386 = vadd.f32 %v264, %v385
    %v387 = vpop.f32.mrf.mxu0
    %388 = vdwg.mxu0
    %v389 = vmul.f32 %v373, 0.5
    %v390 = vmul.f32 %v386, 0.5
    %v391 = vmul.f32 %v373, 0.70710677
    %v392 = vmul.f32 %v386, 0.70710677
    %v393 = vmul.f32 %v391, %v391
    %v394 = vmin.f32 16.0, %v393
    %v395 = vmul.f32 %v394, 2.1237322e-06
    %v396 = vadd.f32 %v395, 0.00028619796
    %v397 = vmul.f32 %v394, %v396
    %v398 = vadd.f32 %v397, 0.0036580483
    %v399 = vmul.f32 %v394, %v398
    %v400 = vadd.f32 %v399, 0.05243302
    %v401 = vmul.f32 %v394, %v400
    %v402 = vadd.f32 %v401, 0.18741608
    %v403 = vmul.f32 %v394, %v402
    %v404 = vadd.f32 %v403, 1.1283791
    %v405 = vmul.f32 %v391, %v404
    %v406 = vmul.f32 %v394, 3.8918573e-05
    %v407 = vadd.f32 %v406, 0.001143296
    %v408 = vmul.f32 %v394, %v407
    %v409 = vadd.f32 %v408, 0.014752088
    %v410 = vmul.f32 %v394, %v409
    %v411 = vadd.f32 %v410, 0.112945676
    %v412 = vmul.f32 %v394, %v411
    %v413 = vadd.f32 %v412, 0.4994258
    %v414 = vmul.f32 %v394, %v413
    %v415 = vadd.f32 %v414, 1.0
    %v416 = vrcp.pop %v415
    %v417 = vmul.f32 %v415, %v416
    %v418 = vsub.f32 1.0, %v417
    %v419 = vmul.f32 %v416, %v418
    %v420 = vadd.f32 %v416, %v419
    %vm421 = vweird.f32 %v415
    %vm422 = vweird.f32 %v416
    %vm423 = vmor %vm421, %vm422
    %v424 = vsel %vm423, %v416, %v420
    %v425 = vand.u32 2147483647, %v415
    %vm426 = vcmp.eq.f32.partialorder %v425, 8.507059e+37
    %v427 = vand.u32 %v415, 2147483648
    %v428 = vor.u32 1.1754944e-38, %v427
    %v429 = vsel %vm426, %v428, %v424
    %v430 = vmul.f32 %v405, %v429
    %v431 = vmin.f32 %v430, 1.0
    %v432 = vmax.f32 %v431, -1.0
    %v433 = vmul.f32 %v392, %v392
    %v434 = vmin.f32 16.0, %v433
    %v435 = vmul.f32 %v434, 2.1237322e-06
    %v436 = vadd.f32 %v435, 0.00028619796
    %v437 = vmul.f32 %v434, %v436
    %v438 = vadd.f32 %v437, 0.0036580483
    %v439 = vmul.f32 %v434, %v438
    %v440 = vadd.f32 %v439, 0.05243302
    %v441 = vmul.f32 %v434, %v440
    %v442 = vadd.f32 %v441, 0.18741608
    %v443 = vmul.f32 %v434, %v442
    %v444 = vadd.f32 %v443, 1.1283791
    %v445 = vmul.f32 %v392, %v444
    %v446 = vmul.f32 %v434, 3.8918573e-05
    %v447 = vadd.f32 %v446, 0.001143296
    %v448 = vmul.f32 %v434, %v447
    %v449 = vadd.f32 %v448, 0.014752088
    %v450 = vmul.f32 %v434, %v449
    %v451 = vadd.f32 %v450, 0.112945676
    %v452 = vmul.f32 %v434, %v451
    %v453 = vadd.f32 %v452, 0.4994258
    %v454 = vmul.f32 %v434, %v453
    %v455 = vadd.f32 %v454, 1.0
    %v456 = vrcp.pop %v455
    %v457 = vmul.f32 %v455, %v456
    %v458 = vsub.f32 1.0, %v457
    %v459 = vmul.f32 %v456, %v458
    %v460 = vadd.f32 %v456, %v459
    %vm461 = vweird.f32 %v455
    %vm462 = vweird.f32 %v456
    %vm463 = vmor %vm461, %vm462
    %v464 = vsel %vm463, %v456, %v460
    %v465 = vand.u32 2147483647, %v455
    %vm466 = vcmp.eq.f32.partialorder %v465, 8.507059e+37
    %v467 = vand.u32 %v455, 2147483648
    %v468 = vor.u32 1.1754944e-38, %v467
    %v469 = vsel %vm466, %v468, %v464
    %v470 = vmul.f32 %v445, %v469
    %v471 = vmin.f32 %v470, 1.0
    %v472 = vmax.f32 %v471, -1.0
    %v473 = vadd.f32 %v432, 1.0
    %v474 = vadd.f32 %v472, 1.0
    %v475 = vmul.f32 %v389, %v473
    %v476 = vmul.f32 %v390, %v474
    %v477 = vld [vmem:[#allocation6] sm:$0xff]
    %v478 = vld [vmem:[#allocation6 + $0x8] sm:$0xff]
    %v479 = vld [vmem:[#allocation6 + $0x10] sm:$0xff]
    %v480 = vld [vmem:[#allocation6 + $0x18] sm:$0xff]
    %v481 = vld [vmem:[#allocation6 + $0x20] sm:$0xff]
    %v482 = vld [vmem:[#allocation6 + $0x28] sm:$0xff]
    %v483 = vld [vmem:[#allocation6 + $0x30] sm:$0xff]
    %v484 = vld [vmem:[#allocation6 + $0x38] sm:$0xff]
    %v485 = vld [vmem:[#allocation6 + $0x40] sm:$0xff]
    %v486 = vld [vmem:[#allocation6 + $0x48] sm:$0xff]
    %v487 = vld [vmem:[#allocation6 + $0x50] sm:$0xff]
    %v488 = vld [vmem:[#allocation6 + $0x58] sm:$0xff]
    %v489 = vld [vmem:[#allocation6 + $0x60] sm:$0xff]
    %v490 = vld [vmem:[#allocation6 + $0x68] sm:$0xff]
    %v491 = vld [vmem:[#allocation6 + $0x70] sm:$0xff]
    %v492 = vld [vmem:[#allocation6 + $0x78] sm:$0xff]
    %v493 = vpack.c.bf16 %v475, %v475
    %v494 = vpack.c.bf16 %v476, %v476
    %v495 = vperm.slane %v116, 5
    %v512 = vunpack.c.l.b16 %v477
    %v513 = vunpack.c.h.b16 %v477
    %v514 = vunpack.c.l.b16 %v478
    %v515 = vunpack.c.h.b16 %v478
    %v516 = vunpack.c.l.b16 %v479
    %v517 = vunpack.c.h.b16 %v479
    %v518 = vunpack.c.l.b16 %v480
    %v519 = vunpack.c.h.b16 %v480
    %v520 = vunpack.c.l.b16 %v481
    %v521 = vunpack.c.h.b16 %v481
    %v522 = vunpack.c.l.b16 %v482
    %v523 = vunpack.c.h.b16 %v482
    %v524 = vunpack.c.l.b16 %v483
    %v525 = vunpack.c.h.b16 %v483
    %v526 = vunpack.c.l.b16 %v484
    %v527 = vunpack.c.h.b16 %v484
    %v528 = vunpack.c.l.b16 %v485
    %v529 = vunpack.c.h.b16 %v485
    %v530 = vunpack.c.l.b16 %v486
    %v531 = vunpack.c.h.b16 %v486
    %v532 = vunpack.c.l.b16 %v487
    %v533 = vunpack.c.h.b16 %v487
    %v534 = vunpack.c.l.b16 %v488
    %v535 = vunpack.c.h.b16 %v488
    %v536 = vunpack.c.l.b16 %v489
    %v537 = vunpack.c.h.b16 %v489
    %v538 = vunpack.c.l.b16 %v490
    %v539 = vunpack.c.h.b16 %v490
    %v540 = vunpack.c.l.b16 %v491
    %v541 = vunpack.c.h.b16 %v491
    %v542 = vunpack.c.l.b16 %v492
    %v543 = vunpack.c.h.b16 %v492
    %v544 = vpack.c.b16 %v514, %v512
    %v545 = vpack.c.b16 %v515, %v513
    %v546 = vpack.c.b16 %v518, %v516
    %v547 = vpack.c.b16 %v519, %v517
    %v548 = vpack.c.b16 %v522, %v520
    %v549 = vpack.c.b16 %v523, %v521
    %v550 = vpack.c.b16 %v526, %v524
    %v551 = vpack.c.b16 %v527, %v525
    %v552 = vpack.c.b16 %v530, %v528
    %v553 = vpack.c.b16 %v531, %v529
    %v554 = vpack.c.b16 %v534, %v532
    %v555 = vpack.c.b16 %v535, %v533
    %v556 = vpack.c.b16 %v538, %v536
    %v557 = vpack.c.b16 %v539, %v537
    %v558 = vpack.c.b16 %v542, %v540
    %v559 = vpack.c.b16 %v543, %v541
    %576 = vmatpush.bf16.xpose.msra.mxu0 %v558
    %577 = vmatpush.bf16.xpose.msra.mxu0 %v556
    %578 = vmatpush.bf16.xpose.msra.mxu0 %v554
    %579 = vmatpush.bf16.xpose.msra.mxu0 %v552
    %580 = vmatpush.bf16.xpose.msra.mxu0 %v550
    %581 = vmatpush.bf16.xpose.msra.mxu0 %v548
    %582 = vmatpush.bf16.xpose.msra.mxu0 %v546
    %583 = vmatpush.bf16.xpose.msra.mxu0 %v544
    %584 = vmatmul.bf16.gmra.mxu0 %v493
    %v585 = vpop.f32.mrf.mxu0
    %v586 = vadd.f32 %v495, %v585
    %v587 = vpop.f32.mrf.mxu0
    %588 = vdwg.mxu0
    %589 = vmatpush.bf16.xpose.msra.mxu0 %v559
    %590 = vmatpush.bf16.xpose.msra.mxu0 %v557
    %591 = vmatpush.bf16.xpose.msra.mxu0 %v555
    %592 = vmatpush.bf16.xpose.msra.mxu0 %v553
    %593 = vmatpush.bf16.xpose.msra.mxu0 %v551
    %594 = vmatpush.bf16.xpose.msra.mxu0 %v549
    %595 = vmatpush.bf16.xpose.msra.mxu0 %v547
    %596 = vmatpush.bf16.xpose.msra.mxu0 %v545
    %597 = vmatmul.bf16.gmra.mxu0 %v494
    %v598 = vpop.f32.mrf.mxu0
    %v599 = vadd.f32 %v586, %v598
    %v600 = vpop.f32.mrf.mxu0
    %601 = vdwg.mxu0
    %v602 = vadd.f32 %v227, %v599
    %603 = vadd.xlane.f32.xlu0 %v602
    %v604 = vpop.xlane.xlu0 %603
    %v605 = vmul.f32 %v604, %v205
    %v606 = vsub.f32 %v602, %v605
    %v607 = vmul.f32 %v606, %v606
    %608 = vadd.xlane.f32.xlu0 %v607
    %v609 = vpop.xlane.xlu0 %608
    %v610 = vmul.f32 %v609, %v205
    %v611 = vadd.f32 %v610, 1e-05
    %v612 = vrsqrt.pop %v611
    %v613 = vmul.f32 %v612, %v611
    %v614 = vmul.f32 %v613, %v612
    %v615 = vmul.f32 0.5, %v614
    %v616 = vsub.f32 1.5, %v615
    %v617 = vmul.f32 %v612, %v616
    %vm618 = vweird.f32 %v611
    %vm619 = vweird.f32 %v612
    %vm620 = vmor %vm618, %vm619
    %v621 = vsel %vm620, %v612, %v617
    %v622 = vmul.f32 %v606, %v621
    %v623 = vperm.slane %v116, 3
    %v624 = vmul.f32 %v622, %v623
    %v625 = vperm.slane %v116, 4
    %v626 = vadd.f32 %v624, %v625
    %s627 = scalar_lea.vmem [#allocation7], 8
    %v628 = vld [vmem:[%s627] sm:$0xff]
    %s629 = scalar_lea.vmem [#allocation2], 64
    %v630 = vld [vmem:[%s629] sm:$0xf]
    %v631 = vld [vmem:[%s629 + $0x4] sm:$0xf]
    %v632 = vld [vmem:[%s629 + $0x8] sm:$0xf]
    %v633 = vld [vmem:[%s629 + $0xc] sm:$0xf]
    %v634 = vld [vmem:[%s629 + $0x10] sm:$0xf]
    %v635 = vld [vmem:[%s629 + $0x14] sm:$0xf]
    %v636 = vld [vmem:[%s629 + $0x18] sm:$0xf]
    %v637 = vld [vmem:[%s629 + $0x1c] sm:$0xf]
    %v638 = vld [vmem:[%s629 + $0x20] sm:$0xf]
    %v639 = vld [vmem:[%s629 + $0x24] sm:$0xf]
    %v640 = vld [vmem:[%s629 + $0x28] sm:$0xf]
    %v641 = vld [vmem:[%s629 + $0x2c] sm:$0xf]
    %v642 = vld [vmem:[%s629 + $0x30] sm:$0xf]
    %v643 = vld [vmem:[%s629 + $0x34] sm:$0xf]
    %v644 = vld [vmem:[%s629 + $0x38] sm:$0xf]
    %v645 = vld [vmem:[%s629 + $0x3c] sm:$0xf]
    %v646 = vperm.slane %v628, 0
    %v663 = vunpack.c.l.b16 %v630
    %v664 = vunpack.c.l.b16 %v631
    %v665 = vunpack.c.l.b16 %v632
    %v666 = vunpack.c.l.b16 %v633
    %v667 = vunpack.c.l.b16 %v634
    %v668 = vunpack.c.l.b16 %v635
    %v669 = vunpack.c.l.b16 %v636
    %v670 = vunpack.c.l.b16 %v637
    %v671 = vunpack.c.l.b16 %v638
    %v672 = vunpack.c.l.b16 %v639
    %v673 = vunpack.c.l.b16 %v640
    %v674 = vunpack.c.l.b16 %v641
    %v675 = vunpack.c.l.b16 %v642
    %v676 = vunpack.c.l.b16 %v643
    %v677 = vunpack.c.l.b16 %v644
    %v678 = vunpack.c.l.b16 %v645
    %v679 = vpack.c.b16 %v664, %v663
    %v680 = vpack.c.b16 %v666, %v665
    %v681 = vpack.c.b16 %v668, %v667
    %v682 = vpack.c.b16 %v670, %v669
    %v683 = vpack.c.b16 %v672, %v671
    %v684 = vpack.c.b16 %v674, %v673
    %v685 = vpack.c.b16 %v676, %v675
    %v686 = vpack.c.b16 %v678, %v677
    %695 = vmatpush.bf16.xpose.msra.mxu0 %v686
    %696 = vmatpush.bf16.xpose.msra.mxu0 %v685
    %697 = vmatpush.bf16.xpose.msra.mxu0 %v684
    %698 = vmatpush.bf16.xpose.msra.mxu0 %v683
    %699 = vmatpush.bf16.xpose.msra.mxu0 %v682
    %700 = vmatpush.bf16.xpose.msra.mxu0 %v681
    %701 = vmatpush.bf16.xpose.msra.mxu0 %v680
    %702 = vmatpush.bf16.xpose.msra.mxu0 %v679
    %703 = vmatmul.bf16.gmra.mxu0 %v133
    %v704 = vpop.f32.mrf.mxu0
    %v705 = vadd.f32 %v646, %v704
    %v706 = vpop.f32.mrf.mxu0
    %707 = vdwg.mxu0
    %v708 = vadd.f32 %v626, %v705
    %709 = vadd.xlane.f32.xlu0 %v708
    %v710 = vpop.xlane.xlu0 %709
    %v711 = vmul.f32 %v710, %v205
    %v712 = vsub.f32 %v708, %v711
    %v713 = vmul.f32 %v712, %v712
    %714 = vadd.xlane.f32.xlu0 %v713
    %v715 = vpop.xlane.xlu0 %714
    %v716 = vmul.f32 %v715, %v205
    %v717 = vadd.f32 %v716, 1e-05
    %v718 = vrsqrt.pop %v717
    %v719 = vmul.f32 %v718, %v717
    %v720 = vmul.f32 %v719, %v718
    %v721 = vmul.f32 0.5, %v720
    %v722 = vsub.f32 1.5, %v721
    %v723 = vmul.f32 %v718, %v722
    %vm724 = vweird.f32 %v717
    %vm725 = vweird.f32 %v718
    %vm726 = vmor %vm724, %vm725
    %v727 = vsel %vm726, %v718, %v723
    %v728 = vmul.f32 %v712, %v727
    %v729 = vperm.slane %v628, 1
    %v730 = vmul.f32 %v728, %v729
    %v731 = vperm.slane %v628, 2
    %v732 = vadd.f32 %v730, %v731
    %s733 = scalar_lea.vmem [#allocation4], 128
    %v734 = vld [vmem:[%s733] sm:$0xf]
    %v735 = vld [vmem:[%s733 + $0x4] sm:$0xf]
    %v736 = vld [vmem:[%s733 + $0x8] sm:$0xf]
    %v737 = vld [vmem:[%s733 + $0xc] sm:$0xf]
    %v738 = vld [vmem:[%s733 + $0x10] sm:$0xf]
    %v739 = vld [vmem:[%s733 + $0x14] sm:$0xf]
    %v740 = vld [vmem:[%s733 + $0x18] sm:$0xf]
    %v741 = vld [vmem:[%s733 + $0x1c] sm:$0xf]
    %v742 = vld [vmem:[%s733 + $0x20] sm:$0xf]
    %v743 = vld [vmem:[%s733 + $0x24] sm:$0xf]
    %v744 = vld [vmem:[%s733 + $0x28] sm:$0xf]
    %v745 = vld [vmem:[%s733 + $0x2c] sm:$0xf]
    %v746 = vld [vmem:[%s733 + $0x30] sm:$0xf]
    %v747 = vld [vmem:[%s733 + $0x34] sm:$0xf]
    %v748 = vld [vmem:[%s733 + $0x38] sm:$0xf]
    %v749 = vld [vmem:[%s733 + $0x3c] sm:$0xf]
    %v750 = vld [vmem:[%s733 + $0x40] sm:$0xf]
    %v751 = vld [vmem:[%s733 + $0x44] sm:$0xf]
    %v752 = vld [vmem:[%s733 + $0x48] sm:$0xf]
    %v753 = vld [vmem:[%s733 + $0x4c] sm:$0xf]
    %v754 = vld [vmem:[%s733 + $0x50] sm:$0xf]
    %v755 = vld [vmem:[%s733 + $0x54] sm:$0xf]
    %v756 = vld [vmem:[%s733 + $0x58] sm:$0xf]
    %v757 = vld [vmem:[%s733 + $0x5c] sm:$0xf]
    %v758 = vld [vmem:[%s733 + $0x60] sm:$0xf]
    %v759 = vld [vmem:[%s733 + $0x64] sm:$0xf]
    %v760 = vld [vmem:[%s733 + $0x68] sm:$0xf]
    %v761 = vld [vmem:[%s733 + $0x6c] sm:$0xf]
    %v762 = vld [vmem:[%s733 + $0x70] sm:$0xf]
    %v763 = vld [vmem:[%s733 + $0x74] sm:$0xf]
    %v764 = vld [vmem:[%s733 + $0x78] sm:$0xf]
    %v765 = vld [vmem:[%s733 + $0x7c] sm:$0xf]
    %s766 = scalar_lea.vmem %s4, 2
    %v767 = vld [vmem:[%s766] sm:$0x3]
    %v768 = vpack.c.bf16 %v732, %v732
    %v770 = vperm.slane %v767, 0
    %v771 = vperm.slane %v767, 1
    %v806 = vunpack.c.l.b16 %v734
    %v807 = vunpack.c.l.b16 %v735
    %v808 = vunpack.c.l.b16 %v736
    %v809 = vunpack.c.l.b16 %v737
    %v810 = vunpack.c.l.b16 %v738
    %v811 = vunpack.c.l.b16 %v739
    %v812 = vunpack.c.l.b16 %v740
    %v813 = vunpack.c.l.b16 %v741
    %v814 = vunpack.c.l.b16 %v742
    %v815 = vunpack.c.l.b16 %v743
    %v816 = vunpack.c.l.b16 %v744
    %v817 = vunpack.c.l.b16 %v745
    %v818 = vunpack.c.l.b16 %v746
    %v819 = vunpack.c.l.b16 %v747
    %v820 = vunpack.c.l.b16 %v748
    %v821 = vunpack.c.l.b16 %v749
    %v822 = vunpack.c.l.b16 %v750
    %v823 = vunpack.c.l.b16 %v751
    %v824 = vunpack.c.l.b16 %v752
    %v825 = vunpack.c.l.b16 %v753
    %v826 = vunpack.c.l.b16 %v754
    %v827 = vunpack.c.l.b16 %v755
    %v828 = vunpack.c.l.b16 %v756
    %v829 = vunpack.c.l.b16 %v757
    %v830 = vunpack.c.l.b16 %v758
    %v831 = vunpack.c.l.b16 %v759
    %v832 = vunpack.c.l.b16 %v760
    %v833 = vunpack.c.l.b16 %v761
    %v834 = vunpack.c.l.b16 %v762
    %v835 = vunpack.c.l.b16 %v763
    %v836 = vunpack.c.l.b16 %v764
    %v837 = vunpack.c.l.b16 %v765
    %v838 = vpack.c.b16 %v807, %v806
    %v839 = vpack.c.b16 %v809, %v808
    %v840 = vpack.c.b16 %v811, %v810
    %v841 = vpack.c.b16 %v813, %v812
    %v842 = vpack.c.b16 %v815, %v814
    %v843 = vpack.c.b16 %v817, %v816
    %v844 = vpack.c.b16 %v819, %v818
    %v845 = vpack.c.b16 %v821, %v820
    %v846 = vpack.c.b16 %v823, %v822
    %v847 = vpack.c.b16 %v825, %v824
    %v848 = vpack.c.b16 %v827, %v826
    %v849 = vpack.c.b16 %v829, %v828
    %v850 = vpack.c.b16 %v831, %v830
    %v851 = vpack.c.b16 %v833, %v832
    %v852 = vpack.c.b16 %v835, %v834
    %v853 = vpack.c.b16 %v837, %v836
    %870 = vmatpush.bf16.xpose.msra.mxu0 %v845
    %871 = vmatpush.bf16.xpose.msra.mxu0 %v844
    %872 = vmatpush.bf16.xpose.msra.mxu0 %v843
    %873 = vmatpush.bf16.xpose.msra.mxu0 %v842
    %874 = vmatpush.bf16.xpose.msra.mxu0 %v841
    %875 = vmatpush.bf16.xpose.msra.mxu0 %v840
    %876 = vmatpush.bf16.xpose.msra.mxu0 %v839
    %877 = vmatpush.bf16.xpose.msra.mxu0 %v838
    %878 = vmatmul.bf16.gmra.mxu0 %v768
    %v879 = vpop.f32.mrf.mxu0
    %v880 = vadd.f32 %v770, %v879
    %v881 = vpop.f32.mrf.mxu0
    %882 = vdwg.mxu0
    %883 = vmatpush.bf16.xpose.msra.mxu0 %v853
    %884 = vmatpush.bf16.xpose.msra.mxu0 %v852
    %885 = vmatpush.bf16.xpose.msra.mxu0 %v851
    %886 = vmatpush.bf16.xpose.msra.mxu0 %v850
    %887 = vmatpush.bf16.xpose.msra.mxu0 %v849
    %888 = vmatpush.bf16.xpose.msra.mxu0 %v848
    %889 = vmatpush.bf16.xpose.msra.mxu0 %v847
    %890 = vmatpush.bf16.xpose.msra.mxu0 %v846
    %891 = vmatmul.bf16.gmra.mxu0 %v768
    %v892 = vpop.f32.mrf.mxu0
    %v893 = vadd.f32 %v771, %v892
    %v894 = vpop.f32.mrf.mxu0
    %895 = vdwg.mxu0
    %v896 = vmul.f32 %v880, 0.5
    %v897 = vmul.f32 %v893, 0.5
    %v898 = vmul.f32 %v880, 0.70710677
    %v899 = vmul.f32 %v893, 0.70710677
    %v900 = vmul.f32 %v898, %v898
    %v901 = vmin.f32 16.0, %v900
    %v902 = vmul.f32 %v901, 2.1237322e-06
    %v903 = vadd.f32 %v902, 0.00028619796
    %v904 = vmul.f32 %v901, %v903
    %v905 = vadd.f32 %v904, 0.0036580483
    %v906 = vmul.f32 %v901, %v905
    %v907 = vadd.f32 %v906, 0.05243302
    %v908 = vmul.f32 %v901, %v907
    %v909 = vadd.f32 %v908, 0.18741608
    %v910 = vmul.f32 %v901, %v909
    %v911 = vadd.f32 %v910, 1.1283791
    %v912 = vmul.f32 %v898, %v911
    %v913 = vmul.f32 %v901, 3.8918573e-05
    %v914 = vadd.f32 %v913, 0.001143296
    %v915 = vmul.f32 %v901, %v914
    %v916 = vadd.f32 %v915, 0.014752088
    %v917 = vmul.f32 %v901, %v916
    %v918 = vadd.f32 %v917, 0.112945676
    %v919 = vmul.f32 %v901, %v918
    %v920 = vadd.f32 %v919, 0.4994258
    %v921 = vmul.f32 %v901, %v920
    %v922 = vadd.f32 %v921, 1.0
    %v923 = vrcp.pop %v922
    %v924 = vmul.f32 %v922, %v923
    %v925 = vsub.f32 1.0, %v924
    %v926 = vmul.f32 %v923, %v925
    %v927 = vadd.f32 %v923, %v926
    %vm928 = vweird.f32 %v922
    %vm929 = vweird.f32 %v923
    %vm930 = vmor %vm928, %vm929
    %v931 = vsel %vm930, %v923, %v927
    %v932 = vand.u32 2147483647, %v922
    %vm933 = vcmp.eq.f32.partialorder %v932, 8.507059e+37
    %v934 = vand.u32 %v922, 2147483648
    %v935 = vor.u32 1.1754944e-38, %v934
    %v936 = vsel %vm933, %v935, %v931
    %v937 = vmul.f32 %v912, %v936
    %v938 = vmin.f32 %v937, 1.0
    %v939 = vmax.f32 %v938, -1.0
    %v940 = vmul.f32 %v899, %v899
    %v941 = vmin.f32 16.0, %v940
    %v942 = vmul.f32 %v941, 2.1237322e-06
    %v943 = vadd.f32 %v942, 0.00028619796
    %v944 = vmul.f32 %v941, %v943
    %v945 = vadd.f32 %v944, 0.0036580483
    %v946 = vmul.f32 %v941, %v945
    %v947 = vadd.f32 %v946, 0.05243302
    %v948 = vmul.f32 %v941, %v947
    %v949 = vadd.f32 %v948, 0.18741608
    %v950 = vmul.f32 %v941, %v949
    %v951 = vadd.f32 %v950, 1.1283791
    %v952 = vmul.f32 %v899, %v951
    %v953 = vmul.f32 %v941, 3.8918573e-05
    %v954 = vadd.f32 %v953, 0.001143296
    %v955 = vmul.f32 %v941, %v954
    %v956 = vadd.f32 %v955, 0.014752088
    %v957 = vmul.f32 %v941, %v956
    %v958 = vadd.f32 %v957, 0.112945676
    %v959 = vmul.f32 %v941, %v958
    %v960 = vadd.f32 %v959, 0.4994258
    %v961 = vmul.f32 %v941, %v960
    %v962 = vadd.f32 %v961, 1.0
    %v963 = vrcp.pop %v962
    %v964 = vmul.f32 %v962, %v963
    %v965 = vsub.f32 1.0, %v964
    %v966 = vmul.f32 %v963, %v965
    %v967 = vadd.f32 %v963, %v966
    %vm968 = vweird.f32 %v962
    %vm969 = vweird.f32 %v963
    %vm970 = vmor %vm968, %vm969
    %v971 = vsel %vm970, %v963, %v967
    %v972 = vand.u32 2147483647, %v962
    %vm973 = vcmp.eq.f32.partialorder %v972, 8.507059e+37
    %v974 = vand.u32 %v962, 2147483648
    %v975 = vor.u32 1.1754944e-38, %v974
    %v976 = vsel %vm973, %v975, %v971
    %v977 = vmul.f32 %v952, %v976
    %v978 = vmin.f32 %v977, 1.0
    %v979 = vmax.f32 %v978, -1.0
    %v980 = vadd.f32 %v939, 1.0
    %v981 = vadd.f32 %v979, 1.0
    %v982 = vmul.f32 %v896, %v980
    %v983 = vmul.f32 %v897, %v981
    %s984 = scalar_lea.vmem [#allocation6], 128
    %v985 = vld [vmem:[%s984] sm:$0xff]
    %v986 = vld [vmem:[%s984 + $0x8] sm:$0xff]
    %v987 = vld [vmem:[%s984 + $0x10] sm:$0xff]
    %v988 = vld [vmem:[%s984 + $0x18] sm:$0xff]
    %v989 = vld [vmem:[%s984 + $0x20] sm:$0xff]
    %v990 = vld [vmem:[%s984 + $0x28] sm:$0xff]
    %v991 = vld [vmem:[%s984 + $0x30] sm:$0xff]
    %v992 = vld [vmem:[%s984 + $0x38] sm:$0xff]
    %v993 = vld [vmem:[%s984 + $0x40] sm:$0xff]
    %v994 = vld [vmem:[%s984 + $0x48] sm:$0xff]
    %v995 = vld [vmem:[%s984 + $0x50] sm:$0xff]
    %v996 = vld [vmem:[%s984 + $0x58] sm:$0xff]
    %v997 = vld [vmem:[%s984 + $0x60] sm:$0xff]
    %v998 = vld [vmem:[%s984 + $0x68] sm:$0xff]
    %v999 = vld [vmem:[%s984 + $0x70] sm:$0xff]
    %v1000 = vld [vmem:[%s984 + $0x78] sm:$0xff]
    %v1001 = vpack.c.bf16 %v982, %v982
    %v1002 = vpack.c.bf16 %v983, %v983
    %v1003 = vperm.slane %v628, 5
    %v1020 = vunpack.c.l.b16 %v985
    %v1021 = vunpack.c.h.b16 %v985
    %v1022 = vunpack.c.l.b16 %v986
    %v1023 = vunpack.c.h.b16 %v986
    %v1024 = vunpack.c.l.b16 %v987
    %v1025 = vunpack.c.h.b16 %v987
    %v1026 = vunpack.c.l.b16 %v988
    %v1027 = vunpack.c.h.b16 %v988
    %v1028 = vunpack.c.l.b16 %v989
    %v1029 = vunpack.c.h.b16 %v989
    %v1030 = vunpack.c.l.b16 %v990
    %v1031 = vunpack.c.h.b16 %v990
    %v1032 = vunpack.c.l.b16 %v991
    %v1033 = vunpack.c.h.b16 %v991
    %v1034 = vunpack.c.l.b16 %v992
    %v1035 = vunpack.c.h.b16 %v992
    %v1036 = vunpack.c.l.b16 %v993
    %v1037 = vunpack.c.h.b16 %v993
    %v1038 = vunpack.c.l.b16 %v994
    %v1039 = vunpack.c.h.b16 %v994
    %v1040 = vunpack.c.l.b16 %v995
    %v1041 = vunpack.c.h.b16 %v995
    %v1042 = vunpack.c.l.b16 %v996
    %v1043 = vunpack.c.h.b16 %v996
    %v1044 = vunpack.c.l.b16 %v997
    %v1045 = vunpack.c.h.b16 %v997
    %v1046 = vunpack.c.l.b16 %v998
    %v1047 = vunpack.c.h.b16 %v998
    %v1048 = vunpack.c.l.b16 %v999
    %v1049 = vunpack.c.h.b16 %v999
    %v1050 = vunpack.c.l.b16 %v1000
    %v1051 = vunpack.c.h.b16 %v1000
    %v1052 = vpack.c.b16 %v1022, %v1020
    %v1053 = vpack.c.b16 %v1023, %v1021
    %v1054 = vpack.c.b16 %v1026, %v1024
    %v1055 = vpack.c.b16 %v1027, %v1025
    %v1056 = vpack.c.b16 %v1030, %v1028
    %v1057 = vpack.c.b16 %v1031, %v1029
    %v1058 = vpack.c.b16 %v1034, %v1032
    %v1059 = vpack.c.b16 %v1035, %v1033
    %v1060 = vpack.c.b16 %v1038, %v1036
    %v1061 = vpack.c.b16 %v1039, %v1037
    %v1062 = vpack.c.b16 %v1042, %v1040
    %v1063 = vpack.c.b16 %v1043, %v1041
    %v1064 = vpack.c.b16 %v1046, %v1044
    %v1065 = vpack.c.b16 %v1047, %v1045
    %v1066 = vpack.c.b16 %v1050, %v1048
    %v1067 = vpack.c.b16 %v1051, %v1049
    %1084 = vmatpush.bf16.xpose.msra.mxu0 %v1066
    %1085 = vmatpush.bf16.xpose.msra.mxu0 %v1064
    %1086 = vmatpush.bf16.xpose.msra.mxu0 %v1062
    %1087 = vmatpush.bf16.xpose.msra.mxu0 %v1060
    %1088 = vmatpush.bf16.xpose.msra.mxu0 %v1058
    %1089 = vmatpush.bf16.xpose.msra.mxu0 %v1056
    %1090 = vmatpush.bf16.xpose.msra.mxu0 %v1054
    %1091 = vmatpush.bf16.xpose.msra.mxu0 %v1052
    %1092 = vmatmul.bf16.gmra.mxu0 %v1001
    %v1093 = vpop.f32.mrf.mxu0
    %v1094 = vadd.f32 %v1003, %v1093
    %v1095 = vpop.f32.mrf.mxu0
    %1096 = vdwg.mxu0
    %1097 = vmatpush.bf16.xpose.msra.mxu0 %v1067
    %1098 = vmatpush.bf16.xpose.msra.mxu0 %v1065
    %1099 = vmatpush.bf16.xpose.msra.mxu0 %v1063
    %1100 = vmatpush.bf16.xpose.msra.mxu0 %v1061
    %1101 = vmatpush.bf16.xpose.msra.mxu0 %v1059
    %1102 = vmatpush.bf16.xpose.msra.mxu0 %v1057
    %1103 = vmatpush.bf16.xpose.msra.mxu0 %v1055
    %1104 = vmatpush.bf16.xpose.msra.mxu0 %v1053
    %1105 = vmatmul.bf16.gmra.mxu0 %v1002
    %v1106 = vpop.f32.mrf.mxu0
    %v1107 = vadd.f32 %v1094, %v1106
    %v1108 = vpop.f32.mrf.mxu0
    %1109 = vdwg.mxu0
    %v1110 = vadd.f32 %v732, %v1107
    %1111 = vadd.xlane.f32.xlu0 %v1110
    %v1112 = vpop.xlane.xlu0 %1111
    %v1113 = vmul.f32 %v1112, %v205
    %v1114 = vsub.f32 %v1110, %v1113
    %v1115 = vmul.f32 %v1114, %v1114
    %1116 = vadd.xlane.f32.xlu0 %v1115
    %v1117 = vpop.xlane.xlu0 %1116
    %v1118 = vmul.f32 %v1117, %v205
    %v1119 = vadd.f32 %v1118, 1e-05
    %v1120 = vrsqrt.pop %v1119
    %v1121 = vmul.f32 %v1120, %v1119
    %v1122 = vmul.f32 %v1121, %v1120
    %v1123 = vmul.f32 0.5, %v1122
    %v1124 = vsub.f32 1.5, %v1123
    %v1125 = vmul.f32 %v1120, %v1124
    %vm1126 = vweird.f32 %v1119
    %vm1127 = vweird.f32 %v1120
    %vm1128 = vmor %vm1126, %vm1127
    %v1129 = vsel %vm1128, %v1120, %v1125
    %v1130 = vmul.f32 %v1114, %v1129
    %v1131 = vperm.slane %v628, 3
    %v1132 = vmul.f32 %v1130, %v1131
    %v1133 = vperm.slane %v628, 4
    %v1134 = vadd.f32 %v1132, %v1133
    %s1135 = scalar_lea.vmem [#allocation7], 16
    %v1136 = vld [vmem:[%s1135] sm:$0xff]
    %s1137 = scalar_lea.vmem [#allocation2], 128
    %v1138 = vld [vmem:[%s1137] sm:$0xf]
    %v1139 = vld [vmem:[%s1137 + $0x4] sm:$0xf]
    %v1140 = vld [vmem:[%s1137 + $0x8] sm:$0xf]
    %v1141 = vld [vmem:[%s1137 + $0xc] sm:$0xf]
    %v1142 = vld [vmem:[%s1137 + $0x10] sm:$0xf]
    %v1143 = vld [vmem:[%s1137 + $0x14] sm:$0xf]
    %v1144 = vld [vmem:[%s1137 + $0x18] sm:$0xf]
    %v1145 = vld [vmem:[%s1137 + $0x1c] sm:$0xf]
    %v1146 = vld [vmem:[%s1137 + $0x20] sm:$0xf]
    %v1147 = vld [vmem:[%s1137 + $0x24] sm:$0xf]
    %v1148 = vld [vmem:[%s1137 + $0x28] sm:$0xf]
    %v1149 = vld [vmem:[%s1137 + $0x2c] sm:$0xf]
    %v1150 = vld [vmem:[%s1137 + $0x30] sm:$0xf]
    %v1151 = vld [vmem:[%s1137 + $0x34] sm:$0xf]
    %v1152 = vld [vmem:[%s1137 + $0x38] sm:$0xf]
    %v1153 = vld [vmem:[%s1137 + $0x3c] sm:$0xf]
    %v1154 = vperm.slane %v1136, 0
    %v1171 = vunpack.c.l.b16 %v1138
    %v1172 = vunpack.c.l.b16 %v1139
    %v1173 = vunpack.c.l.b16 %v1140
    %v1174 = vunpack.c.l.b16 %v1141
    %v1175 = vunpack.c.l.b16 %v1142
    %v1176 = vunpack.c.l.b16 %v1143
    %v1177 = vunpack.c.l.b16 %v1144
    %v1178 = vunpack.c.l.b16 %v1145
    %v1179 = vunpack.c.l.b16 %v1146
    %v1180 = vunpack.c.l.b16 %v1147
    %v1181 = vunpack.c.l.b16 %v1148
    %v1182 = vunpack.c.l.b16 %v1149
    %v1183 = vunpack.c.l.b16 %v1150
    %v1184 = vunpack.c.l.b16 %v1151
    %v1185 = vunpack.c.l.b16 %v1152
    %v1186 = vunpack.c.l.b16 %v1153
    %v1187 = vpack.c.b16 %v1172, %v1171
    %v1188 = vpack.c.b16 %v1174, %v1173
    %v1189 = vpack.c.b16 %v1176, %v1175
    %v1190 = vpack.c.b16 %v1178, %v1177
    %v1191 = vpack.c.b16 %v1180, %v1179
    %v1192 = vpack.c.b16 %v1182, %v1181
    %v1193 = vpack.c.b16 %v1184, %v1183
    %v1194 = vpack.c.b16 %v1186, %v1185
    %1203 = vmatpush.bf16.xpose.msra.mxu0 %v1194
    %1204 = vmatpush.bf16.xpose.msra.mxu0 %v1193
    %1205 = vmatpush.bf16.xpose.msra.mxu0 %v1192
    %1206 = vmatpush.bf16.xpose.msra.mxu0 %v1191
    %1207 = vmatpush.bf16.xpose.msra.mxu0 %v1190
    %1208 = vmatpush.bf16.xpose.msra.mxu0 %v1189
    %1209 = vmatpush.bf16.xpose.msra.mxu0 %v1188
    %1210 = vmatpush.bf16.xpose.msra.mxu0 %v1187
    %1211 = vmatmul.bf16.gmra.mxu0 %v133
    %v1212 = vpop.f32.mrf.mxu0
    %v1213 = vadd.f32 %v1154, %v1212
    %v1214 = vpop.f32.mrf.mxu0
    %1215 = vdwg.mxu0
    %v1216 = vadd.f32 %v1134, %v1213
    %1217 = vadd.xlane.f32.xlu0 %v1216
    %v1218 = vpop.xlane.xlu0 %1217
    %v1219 = vmul.f32 %v1218, %v205
    %v1220 = vsub.f32 %v1216, %v1219
    %v1221 = vmul.f32 %v1220, %v1220
    %1222 = vadd.xlane.f32.xlu0 %v1221
    %v1223 = vpop.xlane.xlu0 %1222
    %v1224 = vmul.f32 %v1223, %v205
    %v1225 = vadd.f32 %v1224, 1e-05
    %v1226 = vrsqrt.pop %v1225
    %v1227 = vmul.f32 %v1226, %v1225
    %v1228 = vmul.f32 %v1227, %v1226
    %v1229 = vmul.f32 0.5, %v1228
    %v1230 = vsub.f32 1.5, %v1229
    %v1231 = vmul.f32 %v1226, %v1230
    %vm1232 = vweird.f32 %v1225
    %vm1233 = vweird.f32 %v1226
    %vm1234 = vmor %vm1232, %vm1233
    %v1235 = vsel %vm1234, %v1226, %v1231
    %v1236 = vmul.f32 %v1220, %v1235
    %v1237 = vperm.slane %v1136, 1
    %v1238 = vmul.f32 %v1236, %v1237
    %v1239 = vperm.slane %v1136, 2
    %v1240 = vadd.f32 %v1238, %v1239
    %s1241 = scalar_lea.vmem [#allocation4], 256
    %v1242 = vld [vmem:[%s1241] sm:$0xf]
    %v1243 = vld [vmem:[%s1241 + $0x4] sm:$0xf]
    %v1244 = vld [vmem:[%s1241 + $0x8] sm:$0xf]
    %v1245 = vld [vmem:[%s1241 + $0xc] sm:$0xf]
    %v1246 = vld [vmem:[%s1241 + $0x10] sm:$0xf]
    %v1247 = vld [vmem:[%s1241 + $0x14] sm:$0xf]
    %v1248 = vld [vmem:[%s1241 + $0x18] sm:$0xf]
    %v1249 = vld [vmem:[%s1241 + $0x1c] sm:$0xf]
    %v1250 = vld [vmem:[%s1241 + $0x20] sm:$0xf]
    %v1251 = vld [vmem:[%s1241 + $0x24] sm:$0xf]
    %v1252 = vld [vmem:[%s1241 + $0x28] sm:$0xf]
    %v1253 = vld [vmem:[%s1241 + $0x2c] sm:$0xf]
    %v1254 = vld [vmem:[%s1241 + $0x30] sm:$0xf]
    %v1255 = vld [vmem:[%s1241 + $0x34] sm:$0xf]
    %v1256 = vld [vmem:[%s1241 + $0x38] sm:$0xf]
    %v1257 = vld [vmem:[%s1241 + $0x3c] sm:$0xf]
    %v1258 = vld [vmem:[%s1241 + $0x40] sm:$0xf]
    %v1259 = vld [vmem:[%s1241 + $0x44] sm:$0xf]
    %v1260 = vld [vmem:[%s1241 + $0x48] sm:$0xf]
    %v1261 = vld [vmem:[%s1241 + $0x4c] sm:$0xf]
    %v1262 = vld [vmem:[%s1241 + $0x50] sm:$0xf]
    %v1263 = vld [vmem:[%s1241 + $0x54] sm:$0xf]
    %v1264 = vld [vmem:[%s1241 + $0x58] sm:$0xf]
    %v1265 = vld [vmem:[%s1241 + $0x5c] sm:$0xf]
    %v1266 = vld [vmem:[%s1241 + $0x60] sm:$0xf]
    %v1267 = vld [vmem:[%s1241 + $0x64] sm:$0xf]
    %v1268 = vld [vmem:[%s1241 + $0x68] sm:$0xf]
    %v1269 = vld [vmem:[%s1241 + $0x6c] sm:$0xf]
    %v1270 = vld [vmem:[%s1241 + $0x70] sm:$0xf]
    %v1271 = vld [vmem:[%s1241 + $0x74] sm:$0xf]
    %v1272 = vld [vmem:[%s1241 + $0x78] sm:$0xf]
    %v1273 = vld [vmem:[%s1241 + $0x7c] sm:$0xf]
    %s1274 = scalar_lea.vmem %s4, 4
    %v1275 = vld [vmem:[%s1274] sm:$0x3]
    %v1276 = vpack.c.bf16 %v1240, %v1240
    %v1278 = vperm.slane %v1275, 0
    %v1279 = vperm.slane %v1275, 1
    %v1314 = vunpack.c.l.b16 %v1242
    %v1315 = vunpack.c.l.b16 %v1243
    %v1316 = vunpack.c.l.b16 %v1244
    %v1317 = vunpack.c.l.b16 %v1245
    %v1318 = vunpack.c.l.b16 %v1246
    %v1319 = vunpack.c.l.b16 %v1247
    %v1320 = vunpack.c.l.b16 %v1248
    %v1321 = vunpack.c.l.b16 %v1249
    %v1322 = vunpack.c.l.b16 %v1250
    %v1323 = vunpack.c.l.b16 %v1251
    %v1324 = vunpack.c.l.b16 %v1252
    %v1325 = vunpack.c.l.b16 %v1253
    %v1326 = vunpack.c.l.b16 %v1254
    %v1327 = vunpack.c.l.b16 %v1255
    %v1328 = vunpack.c.l.b16 %v1256
    %v1329 = vunpack.c.l.b16 %v1257
    %v1330 = vunpack.c.l.b16 %v1258
    %v1331 = vunpack.c.l.b16 %v1259
    %v1332 = vunpack.c.l.b16 %v1260
    %v1333 = vunpack.c.l.b16 %v1261
    %v1334 = vunpack.c.l.b16 %v1262
    %v1335 = vunpack.c.l.b16 %v1263
    %v1336 = vunpack.c.l.b16 %v1264
    %v1337 = vunpack.c.l.b16 %v1265
    %v1338 = vunpack.c.l.b16 %v1266
    %v1339 = vunpack.c.l.b16 %v1267
    %v1340 = vunpack.c.l.b16 %v1268
    %v1341 = vunpack.c.l.b16 %v1269
    %v1342 = vunpack.c.l.b16 %v1270
    %v1343 = vunpack.c.l.b16 %v1271
    %v1344 = vunpack.c.l.b16 %v1272
    %v1345 = vunpack.c.l.b16 %v1273
    %v1346 = vpack.c.b16 %v1315, %v1314
    %v1347 = vpack.c.b16 %v1317, %v1316
    %v1348 = vpack.c.b16 %v1319, %v1318
    %v1349 = vpack.c.b16 %v1321, %v1320
    %v1350 = vpack.c.b16 %v1323, %v1322
    %v1351 = vpack.c.b16 %v1325, %v1324
    %v1352 = vpack.c.b16 %v1327, %v1326
    %v1353 = vpack.c.b16 %v1329, %v1328
    %v1354 = vpack.c.b16 %v1331, %v1330
    %v1355 = vpack.c.b16 %v1333, %v1332
    %v1356 = vpack.c.b16 %v1335, %v1334
    %v1357 = vpack.c.b16 %v1337, %v1336
    %v1358 = vpack.c.b16 %v1339, %v1338
    %v1359 = vpack.c.b16 %v1341, %v1340
    %v1360 = vpack.c.b16 %v1343, %v1342
    %v1361 = vpack.c.b16 %v1345, %v1344
    %1378 = vmatpush.bf16.xpose.msra.mxu0 %v1353
    %1379 = vmatpush.bf16.xpose.msra.mxu0 %v1352
    %1380 = vmatpush.bf16.xpose.msra.mxu0 %v1351
    %1381 = vmatpush.bf16.xpose.msra.mxu0 %v1350
    %1382 = vmatpush.bf16.xpose.msra.mxu0 %v1349
    %1383 = vmatpush.bf16.xpose.msra.mxu0 %v1348
    %1384 = vmatpush.bf16.xpose.msra.mxu0 %v1347
    %1385 = vmatpush.bf16.xpose.msra.mxu0 %v1346
    %1386 = vmatmul.bf16.gmra.mxu0 %v1276
    %v1387 = vpop.f32.mrf.mxu0
    %v1388 = vadd.f32 %v1278, %v1387
    %v1389 = vpop.f32.mrf.mxu0
    %1390 = vdwg.mxu0
    %1391 = vmatpush.bf16.xpose.msra.mxu0 %v1361
    %1392 = vmatpush.bf16.xpose.msra.mxu0 %v1360
    %1393 = vmatpush.bf16.xpose.msra.mxu0 %v1359
    %1394 = vmatpush.bf16.xpose.msra.mxu0 %v1358
    %1395 = vmatpush.bf16.xpose.msra.mxu0 %v1357
    %1396 = vmatpush.bf16.xpose.msra.mxu0 %v1356
    %1397 = vmatpush.bf16.xpose.msra.mxu0 %v1355
    %1398 = vmatpush.bf16.xpose.msra.mxu0 %v1354
    %1399 = vmatmul.bf16.gmra.mxu0 %v1276
    %v1400 = vpop.f32.mrf.mxu0
    %v1401 = vadd.f32 %v1279, %v1400
    %v1402 = vpop.f32.mrf.mxu0
    %1403 = vdwg.mxu0
    %v1404 = vmul.f32 %v1388, 0.5
    %v1405 = vmul.f32 %v1401, 0.5
    %v1406 = vmul.f32 %v1388, 0.70710677
    %v1407 = vmul.f32 %v1401, 0.70710677
    %v1408 = vmul.f32 %v1406, %v1406
    %v1409 = vmin.f32 16.0, %v1408
    %v1410 = vmul.f32 %v1409, 2.1237322e-06
    %v1411 = vadd.f32 %v1410, 0.00028619796
    %v1412 = vmul.f32 %v1409, %v1411
    %v1413 = vadd.f32 %v1412, 0.0036580483
    %v1414 = vmul.f32 %v1409, %v1413
    %v1415 = vadd.f32 %v1414, 0.05243302
    %v1416 = vmul.f32 %v1409, %v1415
    %v1417 = vadd.f32 %v1416, 0.18741608
    %v1418 = vmul.f32 %v1409, %v1417
    %v1419 = vadd.f32 %v1418, 1.1283791
    %v1420 = vmul.f32 %v1406, %v1419
    %v1421 = vmul.f32 %v1409, 3.8918573e-05
    %v1422 = vadd.f32 %v1421, 0.001143296
    %v1423 = vmul.f32 %v1409, %v1422
    %v1424 = vadd.f32 %v1423, 0.014752088
    %v1425 = vmul.f32 %v1409, %v1424
    %v1426 = vadd.f32 %v1425, 0.112945676
    %v1427 = vmul.f32 %v1409, %v1426
    %v1428 = vadd.f32 %v1427, 0.4994258
    %v1429 = vmul.f32 %v1409, %v1428
    %v1430 = vadd.f32 %v1429, 1.0
    %v1431 = vrcp.pop %v1430
    %v1432 = vmul.f32 %v1430, %v1431
    %v1433 = vsub.f32 1.0, %v1432
    %v1434 = vmul.f32 %v1431, %v1433
    %v1435 = vadd.f32 %v1431, %v1434
    %vm1436 = vweird.f32 %v1430
    %vm1437 = vweird.f32 %v1431
    %vm1438 = vmor %vm1436, %vm1437
    %v1439 = vsel %vm1438, %v1431, %v1435
    %v1440 = vand.u32 2147483647, %v1430
    %vm1441 = vcmp.eq.f32.partialorder %v1440, 8.507059e+37
    %v1442 = vand.u32 %v1430, 2147483648
    %v1443 = vor.u32 1.1754944e-38, %v1442
    %v1444 = vsel %vm1441, %v1443, %v1439
    %v1445 = vmul.f32 %v1420, %v1444
    %v1446 = vmin.f32 %v1445, 1.0
    %v1447 = vmax.f32 %v1446, -1.0
    %v1448 = vmul.f32 %v1407, %v1407
    %v1449 = vmin.f32 16.0, %v1448
    %v1450 = vmul.f32 %v1449, 2.1237322e-06
    %v1451 = vadd.f32 %v1450, 0.00028619796
    %v1452 = vmul.f32 %v1449, %v1451
    %v1453 = vadd.f32 %v1452, 0.0036580483
    %v1454 = vmul.f32 %v1449, %v1453
    %v1455 = vadd.f32 %v1454, 0.05243302
    %v1456 = vmul.f32 %v1449, %v1455
    %v1457 = vadd.f32 %v1456, 0.18741608
    %v1458 = vmul.f32 %v1449, %v1457
    %v1459 = vadd.f32 %v1458, 1.1283791
    %v1460 = vmul.f32 %v1407, %v1459
    %v1461 = vmul.f32 %v1449, 3.8918573e-05
    %v1462 = vadd.f32 %v1461, 0.001143296
    %v1463 = vmul.f32 %v1449, %v1462
    %v1464 = vadd.f32 %v1463, 0.014752088
    %v1465 = vmul.f32 %v1449, %v1464
    %v1466 = vadd.f32 %v1465, 0.112945676
    %v1467 = vmul.f32 %v1449, %v1466
    %v1468 = vadd.f32 %v1467, 0.4994258
    %v1469 = vmul.f32 %v1449, %v1468
    %v1470 = vadd.f32 %v1469, 1.0
    %v1471 = vrcp.pop %v1470
    %v1472 = vmul.f32 %v1470, %v1471
    %v1473 = vsub.f32 1.0, %v1472
    %v1474 = vmul.f32 %v1471, %v1473
    %v1475 = vadd.f32 %v1471, %v1474
    %vm1476 = vweird.f32 %v1470
    %vm1477 = vweird.f32 %v1471
    %vm1478 = vmor %vm1476, %vm1477
    %v1479 = vsel %vm1478, %v1471, %v1475
    %v1480 = vand.u32 2147483647, %v1470
    %vm1481 = vcmp.eq.f32.partialorder %v1480, 8.507059e+37
    %v1482 = vand.u32 %v1470, 2147483648
    %v1483 = vor.u32 1.1754944e-38, %v1482
    %v1484 = vsel %vm1481, %v1483, %v1479
    %v1485 = vmul.f32 %v1460, %v1484
    %v1486 = vmin.f32 %v1485, 1.0
    %v1487 = vmax.f32 %v1486, -1.0
    %v1488 = vadd.f32 %v1447, 1.0
    %v1489 = vadd.f32 %v1487, 1.0
    %v1490 = vmul.f32 %v1404, %v1488
    %v1491 = vmul.f32 %v1405, %v1489
    %s1492 = scalar_lea.vmem [#allocation6], 256
    %v1493 = vld [vmem:[%s1492] sm:$0xff]
    %v1494 = vld [vmem:[%s1492 + $0x8] sm:$0xff]
    %v1495 = vld [vmem:[%s1492 + $0x10] sm:$0xff]
    %v1496 = vld [vmem:[%s1492 + $0x18] sm:$0xff]
    %v1497 = vld [vmem:[%s1492 + $0x20] sm:$0xff]
    %v1498 = vld [vmem:[%s1492 + $0x28] sm:$0xff]
    %v1499 = vld [vmem:[%s1492 + $0x30] sm:$0xff]
    %v1500 = vld [vmem:[%s1492 + $0x38] sm:$0xff]
    %v1501 = vld [vmem:[%s1492 + $0x40] sm:$0xff]
    %v1502 = vld [vmem:[%s1492 + $0x48] sm:$0xff]
    %v1503 = vld [vmem:[%s1492 + $0x50] sm:$0xff]
    %v1504 = vld [vmem:[%s1492 + $0x58] sm:$0xff]
    %v1505 = vld [vmem:[%s1492 + $0x60] sm:$0xff]
    %v1506 = vld [vmem:[%s1492 + $0x68] sm:$0xff]
    %v1507 = vld [vmem:[%s1492 + $0x70] sm:$0xff]
    %v1508 = vld [vmem:[%s1492 + $0x78] sm:$0xff]
    %v1509 = vpack.c.bf16 %v1490, %v1490
    %v1510 = vpack.c.bf16 %v1491, %v1491
    %v1511 = vperm.slane %v1136, 5
    %v1528 = vunpack.c.l.b16 %v1493
    %v1529 = vunpack.c.h.b16 %v1493
    %v1530 = vunpack.c.l.b16 %v1494
    %v1531 = vunpack.c.h.b16 %v1494
    %v1532 = vunpack.c.l.b16 %v1495
    %v1533 = vunpack.c.h.b16 %v1495
    %v1534 = vunpack.c.l.b16 %v1496
    %v1535 = vunpack.c.h.b16 %v1496
    %v1536 = vunpack.c.l.b16 %v1497
    %v1537 = vunpack.c.h.b16 %v1497
    %v1538 = vunpack.c.l.b16 %v1498
    %v1539 = vunpack.c.h.b16 %v1498
    %v1540 = vunpack.c.l.b16 %v1499
    %v1541 = vunpack.c.h.b16 %v1499
    %v1542 = vunpack.c.l.b16 %v1500
    %v1543 = vunpack.c.h.b16 %v1500
    %v1544 = vunpack.c.l.b16 %v1501
    %v1545 = vunpack.c.h.b16 %v1501
    %v1546 = vunpack.c.l.b16 %v1502
    %v1547 = vunpack.c.h.b16 %v1502
    %v1548 = vunpack.c.l.b16 %v1503
    %v1549 = vunpack.c.h.b16 %v1503
    %v1550 = vunpack.c.l.b16 %v1504
    %v1551 = vunpack.c.h.b16 %v1504
    %v1552 = vunpack.c.l.b16 %v1505
    %v1553 = vunpack.c.h.b16 %v1505
    %v1554 = vunpack.c.l.b16 %v1506
    %v1555 = vunpack.c.h.b16 %v1506
    %v1556 = vunpack.c.l.b16 %v1507
    %v1557 = vunpack.c.h.b16 %v1507
    %v1558 = vunpack.c.l.b16 %v1508
    %v1559 = vunpack.c.h.b16 %v1508
    %v1560 = vpack.c.b16 %v1530, %v1528
    %v1561 = vpack.c.b16 %v1531, %v1529
    %v1562 = vpack.c.b16 %v1534, %v1532
    %v1563 = vpack.c.b16 %v1535, %v1533
    %v1564 = vpack.c.b16 %v1538, %v1536
    %v1565 = vpack.c.b16 %v1539, %v1537
    %v1566 = vpack.c.b16 %v1542, %v1540
    %v1567 = vpack.c.b16 %v1543, %v1541
    %v1568 = vpack.c.b16 %v1546, %v1544
    %v1569 = vpack.c.b16 %v1547, %v1545
    %v1570 = vpack.c.b16 %v1550, %v1548
    %v1571 = vpack.c.b16 %v1551, %v1549
    %v1572 = vpack.c.b16 %v1554, %v1552
    %v1573 = vpack.c.b16 %v1555, %v1553
    %v1574 = vpack.c.b16 %v1558, %v1556
    %v1575 = vpack.c.b16 %v1559, %v1557
    %1592 = vmatpush.bf16.xpose.msra.mxu0 %v1574
    %1593 = vmatpush.bf16.xpose.msra.mxu0 %v1572
    %1594 = vmatpush.bf16.xpose.msra.mxu0 %v1570
    %1595 = vmatpush.bf16.xpose.msra.mxu0 %v1568
    %1596 = vmatpush.bf16.xpose.msra.mxu0 %v1566
    %1597 = vmatpush.bf16.xpose.msra.mxu0 %v1564
    %1598 = vmatpush.bf16.xpose.msra.mxu0 %v1562
    %1599 = vmatpush.bf16.xpose.msra.mxu0 %v1560
    %1600 = vmatmul.bf16.gmra.mxu0 %v1509
    %v1601 = vpop.f32.mrf.mxu0
    %v1602 = vadd.f32 %v1511, %v1601
    %v1603 = vpop.f32.mrf.mxu0
    %1604 = vdwg.mxu0
    %1605 = vmatpush.bf16.xpose.msra.mxu0 %v1575
    %1606 = vmatpush.bf16.xpose.msra.mxu0 %v1573
    %1607 = vmatpush.bf16.xpose.msra.mxu0 %v1571
    %1608 = vmatpush.bf16.xpose.msra.mxu0 %v1569
    %1609 = vmatpush.bf16.xpose.msra.mxu0 %v1567
    %1610 = vmatpush.bf16.xpose.msra.mxu0 %v1565
    %1611 = vmatpush.bf16.xpose.msra.mxu0 %v1563
    %1612 = vmatpush.bf16.xpose.msra.mxu0 %v1561
    %1613 = vmatmul.bf16.gmra.mxu0 %v1510
    %v1614 = vpop.f32.mrf.mxu0
    %v1615 = vadd.f32 %v1602, %v1614
    %v1616 = vpop.f32.mrf.mxu0
    %1617 = vdwg.mxu0
    %v1618 = vadd.f32 %v1240, %v1615
    %1619 = vadd.xlane.f32.xlu0 %v1618
    %v1620 = vpop.xlane.xlu0 %1619
    %v1621 = vmul.f32 %v1620, %v205
    %v1622 = vsub.f32 %v1618, %v1621
    %v1623 = vmul.f32 %v1622, %v1622
    %1624 = vadd.xlane.f32.xlu0 %v1623
    %v1625 = vpop.xlane.xlu0 %1624
    %v1626 = vmul.f32 %v1625, %v205
    %v1627 = vadd.f32 %v1626, 1e-05
    %v1628 = vrsqrt.pop %v1627
    %v1629 = vmul.f32 %v1628, %v1627
    %v1630 = vmul.f32 %v1629, %v1628
    %v1631 = vmul.f32 0.5, %v1630
    %v1632 = vsub.f32 1.5, %v1631
    %v1633 = vmul.f32 %v1628, %v1632
    %vm1634 = vweird.f32 %v1627
    %vm1635 = vweird.f32 %v1628
    %vm1636 = vmor %vm1634, %vm1635
    %v1637 = vsel %vm1636, %v1628, %v1633
    %v1638 = vmul.f32 %v1622, %v1637
    %v1639 = vperm.slane %v1136, 3
    %v1640 = vmul.f32 %v1638, %v1639
    %v1641 = vperm.slane %v1136, 4
    %v1642 = vadd.f32 %v1640, %v1641
    %s1643 = scalar_lea.vmem [#allocation7], 24
    %v1644 = vld [vmem:[%s1643] sm:$0xff]
    %s1645 = scalar_lea.vmem [#allocation2], 192
    %v1646 = vld [vmem:[%s1645] sm:$0xf]
    %v1647 = vld [vmem:[%s1645 + $0x4] sm:$0xf]
    %v1648 = vld [vmem:[%s1645 + $0x8] sm:$0xf]
    %v1649 = vld [vmem:[%s1645 + $0xc] sm:$0xf]
    %v1650 = vld [vmem:[%s1645 + $0x10] sm:$0xf]
    %v1651 = vld [vmem:[%s1645 + $0x14] sm:$0xf]
    %v1652 = vld [vmem:[%s1645 + $0x18] sm:$0xf]
    %v1653 = vld [vmem:[%s1645 + $0x1c] sm:$0xf]
    %v1654 = vld [vmem:[%s1645 + $0x20] sm:$0xf]
    %v1655 = vld [vmem:[%s1645 + $0x24] sm:$0xf]
    %v1656 = vld [vmem:[%s1645 + $0x28] sm:$0xf]
    %v1657 = vld [vmem:[%s1645 + $0x2c] sm:$0xf]
    %v1658 = vld [vmem:[%s1645 + $0x30] sm:$0xf]
    %v1659 = vld [vmem:[%s1645 + $0x34] sm:$0xf]
    %v1660 = vld [vmem:[%s1645 + $0x38] sm:$0xf]
    %v1661 = vld [vmem:[%s1645 + $0x3c] sm:$0xf]
    %v1662 = vperm.slane %v1644, 0
    %v1679 = vunpack.c.l.b16 %v1646
    %v1680 = vunpack.c.l.b16 %v1647
    %v1681 = vunpack.c.l.b16 %v1648
    %v1682 = vunpack.c.l.b16 %v1649
    %v1683 = vunpack.c.l.b16 %v1650
    %v1684 = vunpack.c.l.b16 %v1651
    %v1685 = vunpack.c.l.b16 %v1652
    %v1686 = vunpack.c.l.b16 %v1653
    %v1687 = vunpack.c.l.b16 %v1654
    %v1688 = vunpack.c.l.b16 %v1655
    %v1689 = vunpack.c.l.b16 %v1656
    %v1690 = vunpack.c.l.b16 %v1657
    %v1691 = vunpack.c.l.b16 %v1658
    %v1692 = vunpack.c.l.b16 %v1659
    %v1693 = vunpack.c.l.b16 %v1660
    %v1694 = vunpack.c.l.b16 %v1661
    %v1695 = vpack.c.b16 %v1680, %v1679
    %v1696 = vpack.c.b16 %v1682, %v1681
    %v1697 = vpack.c.b16 %v1684, %v1683
    %v1698 = vpack.c.b16 %v1686, %v1685
    %v1699 = vpack.c.b16 %v1688, %v1687
    %v1700 = vpack.c.b16 %v1690, %v1689
    %v1701 = vpack.c.b16 %v1692, %v1691
    %v1702 = vpack.c.b16 %v1694, %v1693
    %1711 = vmatpush.bf16.xpose.msra.mxu0 %v1702
    %1712 = vmatpush.bf16.xpose.msra.mxu0 %v1701
    %1713 = vmatpush.bf16.xpose.msra.mxu0 %v1700
    %1714 = vmatpush.bf16.xpose.msra.mxu0 %v1699
    %1715 = vmatpush.bf16.xpose.msra.mxu0 %v1698
    %1716 = vmatpush.bf16.xpose.msra.mxu0 %v1697
    %1717 = vmatpush.bf16.xpose.msra.mxu0 %v1696
    %1718 = vmatpush.bf16.xpose.msra.mxu0 %v1695
    %1719 = vmatmul.bf16.gmra.mxu0 %v133
    %v1720 = vpop.f32.mrf.mxu0
    %v1721 = vadd.f32 %v1662, %v1720
    %v1722 = vpop.f32.mrf.mxu0
    %1723 = vdwg.mxu0
    %v1724 = vadd.f32 %v1642, %v1721
    %1725 = vadd.xlane.f32.xlu0 %v1724
    %v1726 = vpop.xlane.xlu0 %1725
    %v1727 = vmul.f32 %v1726, %v205
    %v1728 = vsub.f32 %v1724, %v1727
    %v1729 = vmul.f32 %v1728, %v1728
    %1730 = vadd.xlane.f32.xlu0 %v1729
    %v1731 = vpop.xlane.xlu0 %1730
    %v1732 = vmul.f32 %v1731, %v205
    %v1733 = vadd.f32 %v1732, 1e-05
    %v1734 = vrsqrt.pop %v1733
    %v1735 = vmul.f32 %v1734, %v1733
    %v1736 = vmul.f32 %v1735, %v1734
    %v1737 = vmul.f32 0.5, %v1736
    %v1738 = vsub.f32 1.5, %v1737
    %v1739 = vmul.f32 %v1734, %v1738
    %vm1740 = vweird.f32 %v1733
    %vm1741 = vweird.f32 %v1734
    %vm1742 = vmor %vm1740, %vm1741
    %v1743 = vsel %vm1742, %v1734, %v1739
    %v1744 = vmul.f32 %v1728, %v1743
    %v1745 = vperm.slane %v1644, 1
    %v1746 = vmul.f32 %v1744, %v1745
    %v1747 = vperm.slane %v1644, 2
    %v1748 = vadd.f32 %v1746, %v1747
    %s1749 = scalar_lea.vmem [#allocation4], 384
    %v1750 = vld [vmem:[%s1749] sm:$0xf]
    %v1751 = vld [vmem:[%s1749 + $0x4] sm:$0xf]
    %v1752 = vld [vmem:[%s1749 + $0x8] sm:$0xf]
    %v1753 = vld [vmem:[%s1749 + $0xc] sm:$0xf]
    %v1754 = vld [vmem:[%s1749 + $0x10] sm:$0xf]
    %v1755 = vld [vmem:[%s1749 + $0x14] sm:$0xf]
    %v1756 = vld [vmem:[%s1749 + $0x18] sm:$0xf]
    %v1757 = vld [vmem:[%s1749 + $0x1c] sm:$0xf]
    %v1758 = vld [vmem:[%s1749 + $0x20] sm:$0xf]
    %v1759 = vld [vmem:[%s1749 + $0x24] sm:$0xf]
    %v1760 = vld [vmem:[%s1749 + $0x28] sm:$0xf]
    %v1761 = vld [vmem:[%s1749 + $0x2c] sm:$0xf]
    %v1762 = vld [vmem:[%s1749 + $0x30] sm:$0xf]
    %v1763 = vld [vmem:[%s1749 + $0x34] sm:$0xf]
    %v1764 = vld [vmem:[%s1749 + $0x38] sm:$0xf]
    %v1765 = vld [vmem:[%s1749 + $0x3c] sm:$0xf]
    %v1766 = vld [vmem:[%s1749 + $0x40] sm:$0xf]
    %v1767 = vld [vmem:[%s1749 + $0x44] sm:$0xf]
    %v1768 = vld [vmem:[%s1749 + $0x48] sm:$0xf]
    %v1769 = vld [vmem:[%s1749 + $0x4c] sm:$0xf]
    %v1770 = vld [vmem:[%s1749 + $0x50] sm:$0xf]
    %v1771 = vld [vmem:[%s1749 + $0x54] sm:$0xf]
    %v1772 = vld [vmem:[%s1749 + $0x58] sm:$0xf]
    %v1773 = vld [vmem:[%s1749 + $0x5c] sm:$0xf]
    %v1774 = vld [vmem:[%s1749 + $0x60] sm:$0xf]
    %v1775 = vld [vmem:[%s1749 + $0x64] sm:$0xf]
    %v1776 = vld [vmem:[%s1749 + $0x68] sm:$0xf]
    %v1777 = vld [vmem:[%s1749 + $0x6c] sm:$0xf]
    %v1778 = vld [vmem:[%s1749 + $0x70] sm:$0xf]
    %v1779 = vld [vmem:[%s1749 + $0x74] sm:$0xf]
    %v1780 = vld [vmem:[%s1749 + $0x78] sm:$0xf]
    %v1781 = vld [vmem:[%s1749 + $0x7c] sm:$0xf]
    %s1782 = scalar_lea.vmem %s4, 6
    %v1783 = vld [vmem:[%s1782] sm:$0x3]
    %v1784 = vpack.c.bf16 %v1748, %v1748
    %v1786 = vperm.slane %v1783, 0
    %v1787 = vperm.slane %v1783, 1
    %v1822 = vunpack.c.l.b16 %v1750
    %v1823 = vunpack.c.l.b16 %v1751
    %v1824 = vunpack.c.l.b16 %v1752
    %v1825 = vunpack.c.l.b16 %v1753
    %v1826 = vunpack.c.l.b16 %v1754
    %v1827 = vunpack.c.l.b16 %v1755
    %v1828 = vunpack.c.l.b16 %v1756
    %v1829 = vunpack.c.l.b16 %v1757
    %v1830 = vunpack.c.l.b16 %v1758
    %v1831 = vunpack.c.l.b16 %v1759
    %v1832 = vunpack.c.l.b16 %v1760
    %v1833 = vunpack.c.l.b16 %v1761
    %v1834 = vunpack.c.l.b16 %v1762
    %v1835 = vunpack.c.l.b16 %v1763
    %v1836 = vunpack.c.l.b16 %v1764
    %v1837 = vunpack.c.l.b16 %v1765
    %v1838 = vunpack.c.l.b16 %v1766
    %v1839 = vunpack.c.l.b16 %v1767
    %v1840 = vunpack.c.l.b16 %v1768
    %v1841 = vunpack.c.l.b16 %v1769
    %v1842 = vunpack.c.l.b16 %v1770
    %v1843 = vunpack.c.l.b16 %v1771
    %v1844 = vunpack.c.l.b16 %v1772
    %v1845 = vunpack.c.l.b16 %v1773
    %v1846 = vunpack.c.l.b16 %v1774
    %v1847 = vunpack.c.l.b16 %v1775
    %v1848 = vunpack.c.l.b16 %v1776
    %v1849 = vunpack.c.l.b16 %v1777
    %v1850 = vunpack.c.l.b16 %v1778
    %v1851 = vunpack.c.l.b16 %v1779
    %v1852 = vunpack.c.l.b16 %v1780
    %v1853 = vunpack.c.l.b16 %v1781
    %v1854 = vpack.c.b16 %v1823, %v1822
    %v1855 = vpack.c.b16 %v1825, %v1824
    %v1856 = vpack.c.b16 %v1827, %v1826
    %v1857 = vpack.c.b16 %v1829, %v1828
    %v1858 = vpack.c.b16 %v1831, %v1830
    %v1859 = vpack.c.b16 %v1833, %v1832
    %v1860 = vpack.c.b16 %v1835, %v1834
    %v1861 = vpack.c.b16 %v1837, %v1836
    %v1862 = vpack.c.b16 %v1839, %v1838
    %v1863 = vpack.c.b16 %v1841, %v1840
    %v1864 = vpack.c.b16 %v1843, %v1842
    %v1865 = vpack.c.b16 %v1845, %v1844
    %v1866 = vpack.c.b16 %v1847, %v1846
    %v1867 = vpack.c.b16 %v1849, %v1848
    %v1868 = vpack.c.b16 %v1851, %v1850
    %v1869 = vpack.c.b16 %v1853, %v1852
    %1886 = vmatpush.bf16.xpose.msra.mxu0 %v1861
    %1887 = vmatpush.bf16.xpose.msra.mxu0 %v1860
    %1888 = vmatpush.bf16.xpose.msra.mxu0 %v1859
    %1889 = vmatpush.bf16.xpose.msra.mxu0 %v1858
    %1890 = vmatpush.bf16.xpose.msra.mxu0 %v1857
    %1891 = vmatpush.bf16.xpose.msra.mxu0 %v1856
    %1892 = vmatpush.bf16.xpose.msra.mxu0 %v1855
    %1893 = vmatpush.bf16.xpose.msra.mxu0 %v1854
    %1894 = vmatmul.bf16.gmra.mxu0 %v1784
    %v1895 = vpop.f32.mrf.mxu0
    %v1896 = vadd.f32 %v1786, %v1895
    %v1897 = vpop.f32.mrf.mxu0
    %1898 = vdwg.mxu0
    %1899 = vmatpush.bf16.xpose.msra.mxu0 %v1869
    %1900 = vmatpush.bf16.xpose.msra.mxu0 %v1868
    %1901 = vmatpush.bf16.xpose.msra.mxu0 %v1867
    %1902 = vmatpush.bf16.xpose.msra.mxu0 %v1866
    %1903 = vmatpush.bf16.xpose.msra.mxu0 %v1865
    %1904 = vmatpush.bf16.xpose.msra.mxu0 %v1864
    %1905 = vmatpush.bf16.xpose.msra.mxu0 %v1863
    %1906 = vmatpush.bf16.xpose.msra.mxu0 %v1862
    %1907 = vmatmul.bf16.gmra.mxu0 %v1784
    %v1908 = vpop.f32.mrf.mxu0
    %v1909 = vadd.f32 %v1787, %v1908
    %v1910 = vpop.f32.mrf.mxu0
    %1911 = vdwg.mxu0
    %v1912 = vmul.f32 %v1896, 0.5
    %v1913 = vmul.f32 %v1909, 0.5
    %v1914 = vmul.f32 %v1896, 0.70710677
    %v1915 = vmul.f32 %v1909, 0.70710677
    %v1916 = vmul.f32 %v1914, %v1914
    %v1917 = vmin.f32 16.0, %v1916
    %v1918 = vmul.f32 %v1917, 2.1237322e-06
    %v1919 = vadd.f32 %v1918, 0.00028619796
    %v1920 = vmul.f32 %v1917, %v1919
    %v1921 = vadd.f32 %v1920, 0.0036580483
    %v1922 = vmul.f32 %v1917, %v1921
    %v1923 = vadd.f32 %v1922, 0.05243302
    %v1924 = vmul.f32 %v1917, %v1923
    %v1925 = vadd.f32 %v1924, 0.18741608
    %v1926 = vmul.f32 %v1917, %v1925
    %v1927 = vadd.f32 %v1926, 1.1283791
    %v1928 = vmul.f32 %v1914, %v1927
    %v1929 = vmul.f32 %v1917, 3.8918573e-05
    %v1930 = vadd.f32 %v1929, 0.001143296
    %v1931 = vmul.f32 %v1917, %v1930
    %v1932 = vadd.f32 %v1931, 0.014752088
    %v1933 = vmul.f32 %v1917, %v1932
    %v1934 = vadd.f32 %v1933, 0.112945676
    %v1935 = vmul.f32 %v1917, %v1934
    %v1936 = vadd.f32 %v1935, 0.4994258
    %v1937 = vmul.f32 %v1917, %v1936
    %v1938 = vadd.f32 %v1937, 1.0
    %v1939 = vrcp.pop %v1938
    %v1940 = vmul.f32 %v1938, %v1939
    %v1941 = vsub.f32 1.0, %v1940
    %v1942 = vmul.f32 %v1939, %v1941
    %v1943 = vadd.f32 %v1939, %v1942
    %vm1944 = vweird.f32 %v1938
    %vm1945 = vweird.f32 %v1939
    %vm1946 = vmor %vm1944, %vm1945
    %v1947 = vsel %vm1946, %v1939, %v1943
    %v1948 = vand.u32 2147483647, %v1938
    %vm1949 = vcmp.eq.f32.partialorder %v1948, 8.507059e+37
    %v1950 = vand.u32 %v1938, 2147483648
    %v1951 = vor.u32 1.1754944e-38, %v1950
    %v1952 = vsel %vm1949, %v1951, %v1947
    %v1953 = vmul.f32 %v1928, %v1952
    %v1954 = vmin.f32 %v1953, 1.0
    %v1955 = vmax.f32 %v1954, -1.0
    %v1956 = vmul.f32 %v1915, %v1915
    %v1957 = vmin.f32 16.0, %v1956
    %v1958 = vmul.f32 %v1957, 2.1237322e-06
    %v1959 = vadd.f32 %v1958, 0.00028619796
    %v1960 = vmul.f32 %v1957, %v1959
    %v1961 = vadd.f32 %v1960, 0.0036580483
    %v1962 = vmul.f32 %v1957, %v1961
    %v1963 = vadd.f32 %v1962, 0.05243302
    %v1964 = vmul.f32 %v1957, %v1963
    %v1965 = vadd.f32 %v1964, 0.18741608
    %v1966 = vmul.f32 %v1957, %v1965
    %v1967 = vadd.f32 %v1966, 1.1283791
    %v1968 = vmul.f32 %v1915, %v1967
    %v1969 = vmul.f32 %v1957, 3.8918573e-05
    %v1970 = vadd.f32 %v1969, 0.001143296
    %v1971 = vmul.f32 %v1957, %v1970
    %v1972 = vadd.f32 %v1971, 0.014752088
    %v1973 = vmul.f32 %v1957, %v1972
    %v1974 = vadd.f32 %v1973, 0.112945676
    %v1975 = vmul.f32 %v1957, %v1974
    %v1976 = vadd.f32 %v1975, 0.4994258
    %v1977 = vmul.f32 %v1957, %v1976
    %v1978 = vadd.f32 %v1977, 1.0
    %v1979 = vrcp.pop %v1978
    %v1980 = vmul.f32 %v1978, %v1979
    %v1981 = vsub.f32 1.0, %v1980
    %v1982 = vmul.f32 %v1979, %v1981
    %v1983 = vadd.f32 %v1979, %v1982
    %vm1984 = vweird.f32 %v1978
    %vm1985 = vweird.f32 %v1979
    %vm1986 = vmor %vm1984, %vm1985
    %v1987 = vsel %vm1986, %v1979, %v1983
    %v1988 = vand.u32 2147483647, %v1978
    %vm1989 = vcmp.eq.f32.partialorder %v1988, 8.507059e+37
    %v1990 = vand.u32 %v1978, 2147483648
    %v1991 = vor.u32 1.1754944e-38, %v1990
    %v1992 = vsel %vm1989, %v1991, %v1987
    %v1993 = vmul.f32 %v1968, %v1992
    %v1994 = vmin.f32 %v1993, 1.0
    %v1995 = vmax.f32 %v1994, -1.0
    %v1996 = vadd.f32 %v1955, 1.0
    %v1997 = vadd.f32 %v1995, 1.0
    %v1998 = vmul.f32 %v1912, %v1996
    %v1999 = vmul.f32 %v1913, %v1997
    %s2000 = scalar_lea.vmem [#allocation6], 384
    %v2001 = vld [vmem:[%s2000] sm:$0xff]
    %v2002 = vld [vmem:[%s2000 + $0x8] sm:$0xff]
    %v2003 = vld [vmem:[%s2000 + $0x10] sm:$0xff]
    %v2004 = vld [vmem:[%s2000 + $0x18] sm:$0xff]
    %v2005 = vld [vmem:[%s2000 + $0x20] sm:$0xff]
    %v2006 = vld [vmem:[%s2000 + $0x28] sm:$0xff]
    %v2007 = vld [vmem:[%s2000 + $0x30] sm:$0xff]
    %v2008 = vld [vmem:[%s2000 + $0x38] sm:$0xff]
    %v2009 = vld [vmem:[%s2000 + $0x40] sm:$0xff]
    %v2010 = vld [vmem:[%s2000 + $0x48] sm:$0xff]
    %v2011 = vld [vmem:[%s2000 + $0x50] sm:$0xff]
    %v2012 = vld [vmem:[%s2000 + $0x58] sm:$0xff]
    %v2013 = vld [vmem:[%s2000 + $0x60] sm:$0xff]
    %v2014 = vld [vmem:[%s2000 + $0x68] sm:$0xff]
    %v2015 = vld [vmem:[%s2000 + $0x70] sm:$0xff]
    %v2016 = vld [vmem:[%s2000 + $0x78] sm:$0xff]
    %v2017 = vpack.c.bf16 %v1998, %v1998
    %v2018 = vpack.c.bf16 %v1999, %v1999
    %v2019 = vperm.slane %v1644, 5
    %v2036 = vunpack.c.l.b16 %v2001
    %v2037 = vunpack.c.h.b16 %v2001
    %v2038 = vunpack.c.l.b16 %v2002
    %v2039 = vunpack.c.h.b16 %v2002
    %v2040 = vunpack.c.l.b16 %v2003
    %v2041 = vunpack.c.h.b16 %v2003
    %v2042 = vunpack.c.l.b16 %v2004
    %v2043 = vunpack.c.h.b16 %v2004
    %v2044 = vunpack.c.l.b16 %v2005
    %v2045 = vunpack.c.h.b16 %v2005
    %v2046 = vunpack.c.l.b16 %v2006
    %v2047 = vunpack.c.h.b16 %v2006
    %v2048 = vunpack.c.l.b16 %v2007
    %v2049 = vunpack.c.h.b16 %v2007
    %v2050 = vunpack.c.l.b16 %v2008
    %v2051 = vunpack.c.h.b16 %v2008
    %v2052 = vunpack.c.l.b16 %v2009
    %v2053 = vunpack.c.h.b16 %v2009
    %v2054 = vunpack.c.l.b16 %v2010
    %v2055 = vunpack.c.h.b16 %v2010
    %v2056 = vunpack.c.l.b16 %v2011
    %v2057 = vunpack.c.h.b16 %v2011
    %v2058 = vunpack.c.l.b16 %v2012
    %v2059 = vunpack.c.h.b16 %v2012
    %v2060 = vunpack.c.l.b16 %v2013
    %v2061 = vunpack.c.h.b16 %v2013
    %v2062 = vunpack.c.l.b16 %v2014
    %v2063 = vunpack.c.h.b16 %v2014
    %v2064 = vunpack.c.l.b16 %v2015
    %v2065 = vunpack.c.h.b16 %v2015
    %v2066 = vunpack.c.l.b16 %v2016
    %v2067 = vunpack.c.h.b16 %v2016
    %v2068 = vpack.c.b16 %v2038, %v2036
    %v2069 = vpack.c.b16 %v2039, %v2037
    %v2070 = vpack.c.b16 %v2042, %v2040
    %v2071 = vpack.c.b16 %v2043, %v2041
    %v2072 = vpack.c.b16 %v2046, %v2044
    %v2073 = vpack.c.b16 %v2047, %v2045
    %v2074 = vpack.c.b16 %v2050, %v2048
    %v2075 = vpack.c.b16 %v2051, %v2049
    %v2076 = vpack.c.b16 %v2054, %v2052
    %v2077 = vpack.c.b16 %v2055, %v2053
    %v2078 = vpack.c.b16 %v2058, %v2056
    %v2079 = vpack.c.b16 %v2059, %v2057
    %v2080 = vpack.c.b16 %v2062, %v2060
    %v2081 = vpack.c.b16 %v2063, %v2061
    %v2082 = vpack.c.b16 %v2066, %v2064
    %v2083 = vpack.c.b16 %v2067, %v2065
    %2100 = vmatpush.bf16.xpose.msra.mxu0 %v2082
    %2101 = vmatpush.bf16.xpose.msra.mxu0 %v2080
    %2102 = vmatpush.bf16.xpose.msra.mxu0 %v2078
    %2103 = vmatpush.bf16.xpose.msra.mxu0 %v2076
    %2104 = vmatpush.bf16.xpose.msra.mxu0 %v2074
    %2105 = vmatpush.bf16.xpose.msra.mxu0 %v2072
    %2106 = vmatpush.bf16.xpose.msra.mxu0 %v2070
    %2107 = vmatpush.bf16.xpose.msra.mxu0 %v2068
    %2108 = vmatmul.bf16.gmra.mxu0 %v2017
    %v2109 = vpop.f32.mrf.mxu0
    %v2110 = vadd.f32 %v2019, %v2109
    %v2111 = vpop.f32.mrf.mxu0
    %2112 = vdwg.mxu0
    %2113 = vmatpush.bf16.xpose.msra.mxu0 %v2083
    %2114 = vmatpush.bf16.xpose.msra.mxu0 %v2081
    %2115 = vmatpush.bf16.xpose.msra.mxu0 %v2079
    %2116 = vmatpush.bf16.xpose.msra.mxu0 %v2077
    %2117 = vmatpush.bf16.xpose.msra.mxu0 %v2075
    %2118 = vmatpush.bf16.xpose.msra.mxu0 %v2073
    %2119 = vmatpush.bf16.xpose.msra.mxu0 %v2071
    %2120 = vmatpush.bf16.xpose.msra.mxu0 %v2069
    %2121 = vmatmul.bf16.gmra.mxu0 %v2018
    %v2122 = vpop.f32.mrf.mxu0
    %v2123 = vadd.f32 %v2110, %v2122
    %v2124 = vpop.f32.mrf.mxu0
    %2125 = vdwg.mxu0
    %v2126 = vadd.f32 %v1748, %v2123
    %2127 = vadd.xlane.f32.xlu0 %v2126
    %v2128 = vpop.xlane.xlu0 %2127
    %v2129 = vmul.f32 %v2128, %v205
    %v2130 = vsub.f32 %v2126, %v2129
    %v2131 = vmul.f32 %v2130, %v2130
    %2132 = vadd.xlane.f32.xlu0 %v2131
    %v2133 = vpop.xlane.xlu0 %2132
    %v2134 = vmul.f32 %v2133, %v205
    %v2135 = vadd.f32 %v2134, 1e-05
    %v2136 = vrsqrt.pop %v2135
    %v2137 = vmul.f32 %v2136, %v2135
    %v2138 = vmul.f32 %v2137, %v2136
    %v2139 = vmul.f32 0.5, %v2138
    %v2140 = vsub.f32 1.5, %v2139
    %v2141 = vmul.f32 %v2136, %v2140
    %vm2142 = vweird.f32 %v2135
    %vm2143 = vweird.f32 %v2136
    %vm2144 = vmor %vm2142, %vm2143
    %v2145 = vsel %vm2144, %v2136, %v2141
    %v2146 = vmul.f32 %v2130, %v2145
    %v2147 = vperm.slane %v1644, 3
    %v2148 = vmul.f32 %v2146, %v2147
    %v2149 = vperm.slane %v1644, 4
    %v2150 = vadd.f32 %v2148, %v2149
    %2151 = vadd.xlane.f32.xlu0 %v2150
    %v2152 = vpop.xlane.xlu0 %2151
    %v2153 = vmul.f32 %v2152, %v205
    %v2154 = vsub.f32 %v2150, %v2153
    %v2155 = vmul.f32 %v2154, %v2154
    %2156 = vadd.xlane.f32.xlu0 %v2155
    %v2157 = vpop.xlane.xlu0 %2156
    %v2158 = vmul.f32 %v2157, %v205
    %v2159 = vadd.f32 %v2158, 1e-05
    %v2160 = vrsqrt.pop %v2159
    %v2161 = vmul.f32 %v2160, %v2159
    %v2162 = vmul.f32 %v2161, %v2160
    %v2163 = vmul.f32 0.5, %v2162
    %v2164 = vsub.f32 1.5, %v2163
    %v2165 = vmul.f32 %v2160, %v2164
    %vm2166 = vweird.f32 %v2159
    %vm2167 = vweird.f32 %v2160
    %vm2168 = vmor %vm2166, %vm2167
    %v2169 = vsel %vm2168, %v2160, %v2165
    %v2170 = vmul.f32 %v2154, %v2169
    %v2171 = vperm.slane %v110, 0
    %v2172 = vmul.f32 %v2170, %v2171
    %v2173 = vperm.slane %v110, 1
    %v2174 = vadd.f32 %v2172, %v2173
    %v2175 = vld [vmem:[#allocation9] sm:$0xf]
    %v2176 = vld [vmem:[#allocation9 + $0x4] sm:$0xf]
    %v2177 = vld [vmem:[#allocation9 + $0x8] sm:$0xf]
    %v2178 = vld [vmem:[#allocation9 + $0xc] sm:$0xf]
    %v2179 = vld [vmem:[#allocation9 + $0x10] sm:$0xf]
    %v2180 = vld [vmem:[#allocation9 + $0x14] sm:$0xf]
    %v2181 = vld [vmem:[#allocation9 + $0x18] sm:$0xf]
    %v2182 = vld [vmem:[#allocation9 + $0x1c] sm:$0xf]
    %v2183 = vld [vmem:[#allocation9 + $0x20] sm:$0xf]
    %v2184 = vld [vmem:[#allocation9 + $0x24] sm:$0xf]
    %v2185 = vld [vmem:[#allocation9 + $0x28] sm:$0xf]
    %v2186 = vld [vmem:[#allocation9 + $0x2c] sm:$0xf]
    %v2187 = vld [vmem:[#allocation9 + $0x30] sm:$0xf]
    %v2188 = vld [vmem:[#allocation9 + $0x34] sm:$0xf]
    %v2189 = vld [vmem:[#allocation9 + $0x38] sm:$0xf]
    %v2190 = vld [vmem:[#allocation9 + $0x3c] sm:$0xf]
    %v2191 = vpack.c.bf16 %v2174, %v2174
    %v2192 = vperm.slane %v110, 2
    %v2209 = vunpack.c.l.b16 %v2175
    %v2210 = vunpack.c.l.b16 %v2176
    %v2211 = vunpack.c.l.b16 %v2177
    %v2212 = vunpack.c.l.b16 %v2178
    %v2213 = vunpack.c.l.b16 %v2179
    %v2214 = vunpack.c.l.b16 %v2180
    %v2215 = vunpack.c.l.b16 %v2181
    %v2216 = vunpack.c.l.b16 %v2182
    %v2217 = vunpack.c.l.b16 %v2183
    %v2218 = vunpack.c.l.b16 %v2184
    %v2219 = vunpack.c.l.b16 %v2185
    %v2220 = vunpack.c.l.b16 %v2186
    %v2221 = vunpack.c.l.b16 %v2187
    %v2222 = vunpack.c.l.b16 %v2188
    %v2223 = vunpack.c.l.b16 %v2189
    %v2224 = vunpack.c.l.b16 %v2190
    %v2225 = vpack.c.b16 %v2210, %v2209
    %v2226 = vpack.c.b16 %v2212, %v2211
    %v2227 = vpack.c.b16 %v2214, %v2213
    %v2228 = vpack.c.b16 %v2216, %v2215
    %v2229 = vpack.c.b16 %v2218, %v2217
    %v2230 = vpack.c.b16 %v2220, %v2219
    %v2231 = vpack.c.b16 %v2222, %v2221
    %v2232 = vpack.c.b16 %v2224, %v2223
    %2241 = vmatpush.bf16.xpose.msra.mxu0 %v2232
    %2242 = vmatpush.bf16.xpose.msra.mxu0 %v2231
    %2243 = vmatpush.bf16.xpose.msra.mxu0 %v2230
    %2244 = vmatpush.bf16.xpose.msra.mxu0 %v2229
    %2245 = vmatpush.bf16.xpose.msra.mxu0 %v2228
    %2246 = vmatpush.bf16.xpose.msra.mxu0 %v2227
    %2247 = vmatpush.bf16.xpose.msra.mxu0 %v2226
    %2248 = vmatpush.bf16.xpose.msra.mxu0 %v2225
    %2249 = vmatmul.bf16.gmra.mxu0 %v2191
    %v2250 = vpop.f32.mrf.mxu0
    %v2251 = vadd.f32 %v2192, %v2250
    %v2252 = vpop.f32.mrf.mxu0
    %2253 = vdwg.mxu0
    %2254 = vst [vmem:[%s9] sm:$0xff] %v2251
    // Predicated region
    $region58: #{_lambda_.1} parent=1 // pred_check
      _
    $region59: #{_lambda_.1} parent=1 // pred_check_branch
      %2256 = sbr.rel (0) target = $region61
    $region60: #{_lambda_.1} parent=1 // pred_region
      _
    $region61: #{_lambda_.1} parent=1 // pred_fallthru
      _
    // Predicated region
    $region62: #{_lambda_.1} parent=1 // pred_check
      _
    $region63: #{_lambda_.1} parent=1 // pred_check_branch
      %2258 = sbr.rel (0) target = $region65
    $region64: #{_lambda_.1} parent=1 // pred_region
      _
    $region65: #{_lambda_.1} parent=1 // pred_fallthru
      _
    %2259 = vsyncpa [#allocation3], 1
    %2260 = vsyncpa [#allocation5], 1
    %2261 = vsyncpa [#allocation8], 1

</llo_original>
